<compile_context>
chip_gen: v7x
topology: tpu7x:2x2x1
jax: 0.10.0
libtpu: 0.0.40
codegen_flags: <defaults>
</compile_context>

<pallas_src>
import functools

import jax
import jax.numpy as jnp
from jax.experimental import pallas as pl
from jax.experimental.pallas import tpu as pltpu


def _round_up(x, m):
    return (x + m - 1) // m * m


def _onehot_gather(idx, emb_ref):
    """Embedding row gather as one-hot(idx) @ table on the MXU (exact in f32)."""
    tn = idx.shape[0]
    vp = emb_ref.shape[1]
    col = jax.lax.broadcasted_iota(jnp.int32, (tn, vp), 1)          # lane ids
    onehot = (col == idx).astype(jnp.float32)                       # (tn, vp)
    logits = jnp.dot(onehot, emb_ref[...],
                     preferred_element_type=jnp.float32)            # (tn, vp)
    return col, logits


def _bigram_logits_kernel(idx_ref, emb_ref, logits_ref):
    # Inference path: gather only, no cross-entropy work.
    _, logits = _onehot_gather(idx_ref[...], emb_ref)
    logits_ref[...] = logits


def _bigram_loss_kernel(idx_ref, tgt_ref, emb_ref, logits_ref, loss_ref, *,
                        n_valid, v_valid, inv_n):
    # idx_ref/tgt_ref: (TILE, 1) int32   emb_ref: (V_pad, V_pad) f32 (resident)
    # logits_ref:      (TILE, V_pad) f32 loss_ref: (1, 1, 128) f32 per-tile partial
    tile = pl.program_id(0)
    idx = idx_ref[...]
    tgt = tgt_ref[...]
    tn = idx.shape[0]

    col, logits = _onehot_gather(idx, emb_ref)
    logits_ref[...] = logits

    # Validity masks: padded vocab lanes and padded rows of the last tile.
    lane_valid = col < v_valid                                       # (tn, vp)
    row_id = tile * tn + jax.lax.broadcasted_iota(jnp.int32, (tn, 1), 0)
    row_valid = row_id < n_valid                                     # (tn, 1)

    masked = jnp.where(lane_valid, logits, jnp.float32(-1e30))
    m = jnp.max(masked, axis=-1, keepdims=True)
    lse = m + jnp.log(jnp.sum(jnp.exp(masked - m), axis=-1, keepdims=True))
    picked = jnp.sum(logits * (col == tgt).astype(jnp.float32),
                     axis=-1, keepdims=True)
    nll = jnp.where(row_valid, lse - picked, jnp.float32(0.0))       # (tn, 1)

    # Pre-scaled partial sum; wrapper just adds the per-tile partials.
    part = jnp.sum(nll) * jnp.float32(inv_n)
    loss_ref[...] = jnp.broadcast_to(part, loss_ref.shape)


def bigram_forward(idx, emb_table, targets=None, *, tile_n=1024):
    """idx: (B, T) int32, emb_table: (V, V) f32, targets: (B, T) int32 or None.

    Mirrors the PyTorch module:
      targets is None  -> (logits (B, T, V), None)
      targets provided -> (logits (B*T, V),  scalar mean cross-entropy loss)
    """
    B, T = idx.shape
    V = emb_table.shape[0]
    N = B * T

    tile_n = _round_up(tile_n, 256)
    V_pad = _round_up(max(V, 128), 128)
    tile = min(tile_n, _round_up(N, 256))       # 256-aligned MXU M-tiles
    N_pad = _round_up(N, tile)
    num_tiles = N_pad // tile
    grid = (num_tiles,)

    idx_col = jnp.pad(idx.reshape(N, 1).astype(jnp.int32),
                      ((0, N_pad - N), (0, 0)))
    emb_pad = jnp.pad(emb_table.astype(jnp.float32),
                      ((0, V_pad - V), (0, V_pad - V)))

    idx_spec = pl.BlockSpec((tile, 1), lambda i: (i, 0))
    emb_spec = pl.BlockSpec((V_pad, V_pad), lambda i: (0, 0))        # resident
    logits_spec = pl.BlockSpec((tile, V_pad), lambda i: (i, 0))
    cparams = pltpu.CompilerParams(dimension_semantics=("parallel",))

    if targets is None:
        logits_pad = pl.pallas_call(
            _bigram_logits_kernel,
            out_shape=jax.ShapeDtypeStruct((N_pad, V_pad), jnp.float32),
            grid=grid,
            in_specs=[idx_spec, emb_spec],
            out_specs=logits_spec,
            compiler_params=cparams,
        )(idx_col, emb_pad)
        return logits_pad[:N, :V].reshape(B, T, V), None

    tgt_col = jnp.pad(targets.reshape(N, 1).astype(jnp.int32),
                      ((0, N_pad - N), (0, 0)))
    kernel = functools.partial(_bigram_loss_kernel,
                               n_valid=N, v_valid=V, inv_n=1.0 / N)
    logits_pad, loss_parts = pl.pallas_call(
        kernel,
        out_shape=(
            jax.ShapeDtypeStruct((N_pad, V_pad), jnp.float32),
            jax.ShapeDtypeStruct((num_tiles, 1, 128), jnp.float32),
        ),
        grid=grid,
        in_specs=[idx_spec, idx_spec, emb_spec],
        out_specs=(logits_spec, pl.BlockSpec((1, 1, 128), lambda i: (i, 0, 0))),
        compiler_params=cparams,
    )(idx_col, tgt_col, emb_pad)

    logits = logits_pad[:N, :V]
    loss = jnp.sum(loss_parts[:, 0, 0])
    return logits, loss


def _reference(idx, emb_table, targets):
    logits = emb_table[idx]                                   # (B, T, V)
    B, T, V = logits.shape
    lf = logits.reshape(B * T, V)
    tf = targets.reshape(B * T)
    lse = jax.scipy.special.logsumexp(lf, axis=-1)
    picked = jnp.take_along_axis(lf, tf[:, None], axis=-1)[:, 0]
    return lf, jnp.mean(lse - picked)


# TODO(synk): generate() (autoregressive torch.multinomial sampling loop) is not a
# kernel op; it is host-side control flow and is intentionally not implemented here.

if __name__ == "__main__":
    key = jax.random.PRNGKey(0)
    k_emb, k_idx, k_tgt = jax.random.split(key, 3)

    vocab_size = 65          # tiny char-level vocab
    B, T = 2, 8

    # nn.Embedding default init: N(0, 1)
    emb_table = jax.random.normal(k_emb, (vocab_size, vocab_size), jnp.float32)
    idx = jax.random.randint(k_idx, (B, T), 0, vocab_size, jnp.int32)
    targets = jax.random.randint(k_tgt, (B, T), 0, vocab_size, jnp.int32)

    logits, loss = bigram_forward(idx, emb_table, targets)
    jax.block_until_ready((logits, loss))

    ref_logits, ref_loss = _reference(idx, emb_table, targets)
    assert logits.shape == (B * T, vocab_size)
    assert jnp.allclose(logits, ref_logits, atol=1e-5)
    assert jnp.allclose(loss, ref_loss, atol=1e-5), (loss, ref_loss)

    # targets=None path: logits-only kernel, no CE math.
    logits_nt, loss_nt = bigram_forward(idx, emb_table, None)
    jax.block_until_ready(logits_nt)
    assert logits_nt.shape == (B, T, vocab_size)
    assert loss_nt is None
    assert jnp.allclose(logits_nt.reshape(B * T, vocab_size), ref_logits, atol=1e-5)

    # Multi-tile grid with a ragged last tile (exercises row masking / partial sums).
    B2, T2 = 4, 300                 # N = 1200 -> 2 tiles of 1024 rows, 848 padded rows
    idx2 = jax.random.randint(k_idx, (B2, T2), 0, vocab_size, jnp.int32)
    tgt2 = jax.random.randint(k_tgt, (B2, T2), 0, vocab_size, jnp.int32)
    logits2, loss2 = bigram_forward(idx2, emb_table, tgt2)
    jax.block_until_ready((logits2, loss2))
    ref_logits2, ref_loss2 = _reference(idx2, emb_table, tgt2)
    assert jnp.allclose(logits2, ref_logits2, atol=1e-5)
    assert jnp.allclose(loss2, ref_loss2, atol=1e-5), (loss2, ref_loss2)

    print("KERNEL_OK")
</pallas_src>

<mosaic_0001>
module attributes {stable_mosaic.version = 11 : i64} {
  func.func @_bigram_loss_kernel(%arg0: i32, %arg1: memref<256x1xi32, #tpu.memory_space<vmem>>, %arg2: memref<256x1xi32, #tpu.memory_space<vmem>>, %arg3: memref<128x128xf32, #tpu.memory_space<vmem>>, %arg4: memref<256x128xf32, #tpu.memory_space<vmem>>, %arg5: memref<1x1x128xf32, #tpu.memory_space<vmem>>) attributes {dimension_semantics = [#tpu.dimension_semantics<parallel>], iteration_bounds = array<i64: 1>, scalar_prefetch = 0 : i64, scratch_operands = 0 : i64, tpu.core_type = #tpu.core_type<tc>, window_params = [{transform_indices = @transform_0, window_bounds = array<i64: 256, 1>}, {transform_indices = @transform_1, window_bounds = array<i64: 256, 1>}, {pipeline_mode = #tpu.pipeline_mode<synchronous>, transform_indices = @transform_2, window_bounds = array<i64: 128, 128>}, {transform_indices = @transform_3, window_bounds = array<i64: 256, 128>}, {transform_indices = @transform_4, window_bounds = array<i64: 1, 1, 128>}]} {
    %c0 = arith.constant 0 : index
    %c0_0 = arith.constant 0 : index
    %0 = vector.load %arg1[%c0, %c0_0] : memref<256x1xi32, #tpu.memory_space<vmem>>, vector<256x1xi32>
    %c0_1 = arith.constant 0 : index
    %c0_2 = arith.constant 0 : index
    %1 = vector.load %arg2[%c0_1, %c0_2] : memref<256x1xi32, #tpu.memory_space<vmem>>, vector<256x1xi32>
    %2 = tpu.iota {dimensions = array<i32: 1>} : vector<256x128xi32>
    %3 = vector.broadcast %0 : vector<256x1xi32> to vector<256x128xi32>
    %4 = arith.cmpi eq, %2, %3 : vector<256x128xi32>
    %5 = arith.extui %4 : vector<256x128xi1> to vector<256x128xi32>
    %6 = arith.sitofp %5 : vector<256x128xi32> to vector<256x128xf32>
    %c0_3 = arith.constant 0 : index
    %c0_4 = arith.constant 0 : index
    %7 = vector.load %arg3[%c0_3, %c0_4] : memref<128x128xf32, #tpu.memory_space<vmem>>, vector<128x128xf32>
    %cst = arith.constant dense<0.000000e+00> : vector<256x128xf32>
    %8 = tpu.matmul %6, %7, %cst {dimension_numbers = #tpu.dot_dimension_numbers<[1], [0], [0], [1], [0, 0, 1, 1], [], []>} : vector<256x128xf32>, vector<128x128xf32>, vector<256x128xf32> -> vector<256x128xf32>
    %c0_5 = arith.constant 0 : index
    %c0_6 = arith.constant 0 : index
    %9 = vector.load %arg4[%c0_5, %c0_6] : memref<256x128xf32, #tpu.memory_space<vmem>>, vector<256x128xf32>
    tpu.vector_store %arg4[%c0_5, %c0_6], %8 {strides = array<i32>} : memref<256x128xf32, #tpu.memory_space<vmem>>, vector<256x128xf32>,
    %c65_i32 = arith.constant 65 : i32
    %10 = vector.broadcast %c65_i32 : i32 to vector<256x128xi32>
    %11 = arith.cmpi slt, %2, %10 : vector<256x128xi32>
    %c256_i32 = arith.constant 256 : i32
    %12 = arith.muli %arg0, %c256_i32 : i32
    %13 = tpu.iota {dimensions = array<i32: 0>} : vector<256x1xi32>
    %14 = vector.broadcast %12 : i32 to vector<256x1xi32>
    %15 = arith.addi %14, %13 : vector<256x1xi32>
    %c16_i32 = arith.constant 16 : i32
    %16 = vector.broadcast %c16_i32 : i32 to vector<256x1xi32>
    %17 = arith.cmpi slt, %15, %16 : vector<256x1xi32>
    %cst_7 = arith.constant -1.000000e+30 : f32
    %18 = vector.broadcast %cst_7 : f32 to vector<256x128xf32>
    %19 = arith.select %11, %8, %18 : vector<256x128xi1>, vector<256x128xf32>
    %cst_8 = arith.constant dense<0xFF800000> : vector<256xf32>
    %20 = vector.multi_reduction <maximumf>, %19, %cst_8 [1] : vector<256x128xf32> to vector<256xf32>
    %21 = vector.shape_cast %20 : vector<256xf32> to vector<256x1xf32>
    %22 = vector.broadcast %21 : vector<256x1xf32> to vector<256x128xf32>
    %23 = arith.subf %19, %22 : vector<256x128xf32>
    %24 = math.exp %23 : vector<256x128xf32>
    %cst_9 = arith.constant dense<0.000000e+00> : vector<256xf32>
    %25 = vector.multi_reduction <add>, %24, %cst_9 [1] : vector<256x128xf32> to vector<256xf32>
    %26 = vector.shape_cast %25 : vector<256xf32> to vector<256x1xf32>
    %27 = math.log %26 : vector<256x1xf32>
    %28 = arith.addf %21, %27 : vector<256x1xf32>
    %29 = vector.broadcast %1 : vector<256x1xi32> to vector<256x128xi32>
    %30 = arith.cmpi eq, %2, %29 : vector<256x128xi32>
    %31 = arith.extui %30 : vector<256x128xi1> to vector<256x128xi32>
    %32 = arith.sitofp %31 : vector<256x128xi32> to vector<256x128xf32>
    %33 = arith.mulf %8, %32 : vector<256x128xf32>
    %cst_10 = arith.constant dense<0.000000e+00> : vector<256xf32>
    %34 = vector.multi_reduction <add>, %33, %cst_10 [1] : vector<256x128xf32> to vector<256xf32>
    %35 = vector.shape_cast %34 : vector<256xf32> to vector<256x1xf32>
    %36 = arith.subf %28, %35 : vector<256x1xf32>
    %cst_11 = arith.constant 0.000000e+00 : f32
    %37 = vector.broadcast %cst_11 : f32 to vector<256x1xf32>
    %38 = arith.select %17, %36, %37 : vector<256x1xi1>, vector<256x1xf32>
    %39 = vector.shape_cast %38 : vector<256x1xf32> to vector<1x256x1xf32>
    %cst_12 = arith.constant dense<0.000000e+00> : vector<1xf32>
    %40 = vector.multi_reduction <add>, %39, %cst_12 [1, 2] : vector<1x256x1xf32> to vector<1xf32>
    %41 = vector.shape_cast %40 : vector<1xf32> to vector<1x1x1xf32>
    %42 = vector.extract %41[0, 0, 0] : f32 from vector<1x1x1xf32>
    %cst_13 = arith.constant 6.250000e-02 : f32
    %43 = arith.mulf %42, %cst_13 : f32
    %44 = vector.broadcast %43 : f32 to vector<1x1x128xf32>
    %c0_14 = arith.constant 0 : index
    %c0_15 = arith.constant 0 : index
    %c0_16 = arith.constant 0 : index
    %45 = vector.load %arg5[%c0_14, %c0_15, %c0_16] : memref<1x1x128xf32, #tpu.memory_space<vmem>>, vector<1x1x128xf32>
    tpu.vector_store %arg5[%c0_14, %c0_15, %c0_16], %44 {strides = array<i32>} : memref<1x1x128xf32, #tpu.memory_space<vmem>>, vector<1x1x128xf32>,
    return
  }
  func.func @transform_0(%arg0: i32) -> (i32, i32) {
    %c0_i32 = arith.constant 0 : i32
    %c0_i32_0 = arith.constant 0 : i32
    return %arg0, %c0_i32 : i32, i32
  }
  func.func @transform_1(%arg0: i32) -> (i32, i32) {
    %c0_i32 = arith.constant 0 : i32
    %c0_i32_0 = arith.constant 0 : i32
    return %arg0, %c0_i32 : i32, i32
  }
  func.func @transform_2(%arg0: i32) -> (i32, i32) {
    %c0_i32 = arith.constant 0 : i32
    %c0_i32_0 = arith.constant 0 : i32
    %c0_i32_1 = arith.constant 0 : i32
    return %c0_i32, %c0_i32_0 : i32, i32
  }
  func.func @transform_3(%arg0: i32) -> (i32, i32) {
    %c0_i32 = arith.constant 0 : i32
    %c0_i32_0 = arith.constant 0 : i32
    return %arg0, %c0_i32 : i32, i32
  }
  func.func @transform_4(%arg0: i32) -> (i32, i32, i32) {
    %c0_i32 = arith.constant 0 : i32
    %c0_i32_0 = arith.constant 0 : i32
    %c0_i32_1 = arith.constant 0 : i32
    return %arg0, %c0_i32, %c0_i32_0 : i32, i32, i32
  }
}

</mosaic_0001>

<llo_original>
// kernel: tpu_custom_call.1
$region0: #{tpu_custom_call.1}
  #allocation0 [shape = 'u32[]', space=smem, size = 0x4, offset = 0x4, fixed_abs, tag = 'smem constant byte address 0x4 - core index']
  #allocation1 [shape = 'u32[144,128]{1,0:T(1,128)}', space=vmem, size = 0x12000, scoped, tag = 'internal scratch']
  %s0 = inlined_call_operand.vmem [shape: s32[256,1], index: 0, kind: input, shape index: {}]
  %s1 = inlined_call_operand.vmem [shape: s32[256,1], index: 1, kind: input, shape index: {}]
  %s2 = inlined_call_operand.vmem [shape: f32[128,128], index: 2, kind: input, shape index: {}]
  %s3 = inlined_call_operand.hbm [shape: f32[256,128], index: 3, kind: output, shape index: {0}]
  %s4 = inlined_call_operand.hbm [shape: f32[1,1,128], index: 4, kind: output, shape index: {1}]
  %5 = xla_tuple %s3, %s4
  %s6 = sld [smem:[#allocation0]]
  $region30: #{tpu_custom_call.1} parent=0
    _
  %s8 = ssub.s32 1, %s6
  %s9 = scalar_select 0, %s8, %s6
  $region1: #{tpu_custom_call.1} parent=0
    #allocation2 [shape = 'u8[131072]{0}', space=vmem, size = 0x20000, scoped, tag = 'output window, operand 0, single buffered']
    #allocation3 [shape = 's32[1]{0}', space=sflag, size = 0x4, scoped, tag = 'scoped memory for tpu_custom_call.1']
    #allocation4 [shape = 'u8[512]{0}', space=vmem, size = 0x400, scoped, tag = 'output window, operand 1, single buffered']
    #allocation5 [shape = 's32[1]{0}', space=sflag, size = 0x4, scoped, tag = 'scoped memory for tpu_custom_call.1']
    %10 = vsyncpa [#allocation3], 0
    %11 = vsyncpa [#allocation5], 0
    // Predicated region
    $region2: #{tpu_custom_call.1} parent=1 // pred_check
      _
    $region3: #{tpu_custom_call.1} parent=1 // pred_check_branch
      %13 = sbr.rel (0) target = $region5
    $region4: #{tpu_custom_call.1} parent=1 // pred_region
      _
    $region5: #{tpu_custom_call.1} parent=1 // pred_fallthru
      _
    // Predicated region
    $region6: #{tpu_custom_call.1} parent=1 // pred_check
      _
    $region7: #{tpu_custom_call.1} parent=1 // pred_check_branch
      %15 = sbr.rel (0) target = $region9
    $region8: #{tpu_custom_call.1} parent=1 // pred_region
      _
    $region9: #{tpu_custom_call.1} parent=1 // pred_fallthru
      _
    // Predicated region
    $region10: #{tpu_custom_call.1} parent=1 // pred_check
      _
    $region11: #{tpu_custom_call.1} parent=1 // pred_check_branch
      %17 = sbr.rel (0) target = $region13
    $region12: #{tpu_custom_call.1} parent=1 // pred_region
      _
    $region13: #{tpu_custom_call.1} parent=1 // pred_fallthru
      _
    %v18 = vld [vmem:[%s0] sm:$0xff]
    %v19 = vld [vmem:[%s0 + $0x8] sm:$0xff]
    %v20 = vld [vmem:[%s0 + $0x10] sm:$0xff]
    %v21 = vld [vmem:[%s0 + $0x18] sm:$0xff]
    %v22 = vld [vmem:[%s0 + $0x20] sm:$0xff]
    %v23 = vld [vmem:[%s0 + $0x28] sm:$0xff]
    %v24 = vld [vmem:[%s0 + $0x30] sm:$0xff]
    %v25 = vld [vmem:[%s0 + $0x38] sm:$0xff]
    %v26 = vld [vmem:[%s0 + $0x40] sm:$0xff]
    %v27 = vld [vmem:[%s0 + $0x48] sm:$0xff]
    %v28 = vld [vmem:[%s0 + $0x50] sm:$0xff]
    %v29 = vld [vmem:[%s0 + $0x58] sm:$0xff]
    %v30 = vld [vmem:[%s0 + $0x60] sm:$0xff]
    %v31 = vld [vmem:[%s0 + $0x68] sm:$0xff]
    %v32 = vld [vmem:[%s0 + $0x70] sm:$0xff]
    %v33 = vld [vmem:[%s0 + $0x78] sm:$0xff]
    %v34 = vld [vmem:[%s0 + $0x80] sm:$0xff]
    %v35 = vld [vmem:[%s0 + $0x88] sm:$0xff]
    %v36 = vld [vmem:[%s0 + $0x90] sm:$0xff]
    %v37 = vld [vmem:[%s0 + $0x98] sm:$0xff]
    %v38 = vld [vmem:[%s0 + $0xa0] sm:$0xff]
    %v39 = vld [vmem:[%s0 + $0xa8] sm:$0xff]
    %v40 = vld [vmem:[%s0 + $0xb0] sm:$0xff]
    %v41 = vld [vmem:[%s0 + $0xb8] sm:$0xff]
    %v42 = vld [vmem:[%s0 + $0xc0] sm:$0xff]
    %v43 = vld [vmem:[%s0 + $0xc8] sm:$0xff]
    %v44 = vld [vmem:[%s0 + $0xd0] sm:$0xff]
    %v45 = vld [vmem:[%s0 + $0xd8] sm:$0xff]
    %v46 = vld [vmem:[%s0 + $0xe0] sm:$0xff]
    %v47 = vld [vmem:[%s0 + $0xe8] sm:$0xff]
    %v48 = vld [vmem:[%s0 + $0xf0] sm:$0xff]
    %v49 = vld [vmem:[%s0 + $0xf8] sm:$0xff]
    %v50 = vld [vmem:[%s1] sm:$0xff]
    %v51 = vld [vmem:[%s1 + $0x8] sm:$0xff]
    %v52 = vld [vmem:[%s1 + $0x10] sm:$0xff]
    %v53 = vld [vmem:[%s1 + $0x18] sm:$0xff]
    %v54 = vld [vmem:[%s1 + $0x20] sm:$0xff]
    %v55 = vld [vmem:[%s1 + $0x28] sm:$0xff]
    %v56 = vld [vmem:[%s1 + $0x30] sm:$0xff]
    %v57 = vld [vmem:[%s1 + $0x38] sm:$0xff]
    %v58 = vld [vmem:[%s1 + $0x40] sm:$0xff]
    %v59 = vld [vmem:[%s1 + $0x48] sm:$0xff]
    %v60 = vld [vmem:[%s1 + $0x50] sm:$0xff]
    %v61 = vld [vmem:[%s1 + $0x58] sm:$0xff]
    %v62 = vld [vmem:[%s1 + $0x60] sm:$0xff]
    %v63 = vld [vmem:[%s1 + $0x68] sm:$0xff]
    %v64 = vld [vmem:[%s1 + $0x70] sm:$0xff]
    %v65 = vld [vmem:[%s1 + $0x78] sm:$0xff]
    %v66 = vld [vmem:[%s1 + $0x80] sm:$0xff]
    %v67 = vld [vmem:[%s1 + $0x88] sm:$0xff]
    %v68 = vld [vmem:[%s1 + $0x90] sm:$0xff]
    %v69 = vld [vmem:[%s1 + $0x98] sm:$0xff]
    %v70 = vld [vmem:[%s1 + $0xa0] sm:$0xff]
    %v71 = vld [vmem:[%s1 + $0xa8] sm:$0xff]
    %v72 = vld [vmem:[%s1 + $0xb0] sm:$0xff]
    %v73 = vld [vmem:[%s1 + $0xb8] sm:$0xff]
    %v74 = vld [vmem:[%s1 + $0xc0] sm:$0xff]
    %v75 = vld [vmem:[%s1 + $0xc8] sm:$0xff]
    %v76 = vld [vmem:[%s1 + $0xd0] sm:$0xff]
    %v77 = vld [vmem:[%s1 + $0xd8] sm:$0xff]
    %v78 = vld [vmem:[%s1 + $0xe0] sm:$0xff]
    %v79 = vld [vmem:[%s1 + $0xe8] sm:$0xff]
    %v80 = vld [vmem:[%s1 + $0xf0] sm:$0xff]
    %v81 = vld [vmem:[%s1 + $0xf8] sm:$0xff]
    %v82 = vlaneseq
    %v83 = vand.u32 %v82, 127
    %84 = vset.pattern.permute.xlu0 0
    %85 = vperm.xlu0 %84, %v18
    %v86 = vpop.permute.xlu0 %85
    %87 = vset.pattern.permute.xlu0 0
    %88 = vperm.xlu0 %87, %v19
    %v89 = vpop.permute.xlu0 %88
    %90 = vset.pattern.permute.xlu0 0
    %91 = vperm.xlu0 %90, %v20
    %v92 = vpop.permute.xlu0 %91
    %93 = vset.pattern.permute.xlu0 0
    %94 = vperm.xlu0 %93, %v21
    %v95 = vpop.permute.xlu0 %94
    %96 = vset.pattern.permute.xlu0 0
    %97 = vperm.xlu0 %96, %v22
    %v98 = vpop.permute.xlu0 %97
    %99 = vset.pattern.permute.xlu0 0
    %100 = vperm.xlu0 %99, %v23
    %v101 = vpop.permute.xlu0 %100
    %102 = vset.pattern.permute.xlu0 0
    %103 = vperm.xlu0 %102, %v24
    %v104 = vpop.permute.xlu0 %103
    %105 = vset.pattern.permute.xlu0 0
    %106 = vperm.xlu0 %105, %v25
    %v107 = vpop.permute.xlu0 %106
    %108 = vset.pattern.permute.xlu0 0
    %109 = vperm.xlu0 %108, %v26
    %v110 = vpop.permute.xlu0 %109
    %111 = vset.pattern.permute.xlu0 0
    %112 = vperm.xlu0 %111, %v27
    %v113 = vpop.permute.xlu0 %112
    %114 = vset.pattern.permute.xlu0 0
    %115 = vperm.xlu0 %114, %v28
    %v116 = vpop.permute.xlu0 %115
    %117 = vset.pattern.permute.xlu0 0
    %118 = vperm.xlu0 %117, %v29
    %v119 = vpop.permute.xlu0 %118
    %120 = vset.pattern.permute.xlu0 0
    %121 = vperm.xlu0 %120, %v30
    %v122 = vpop.permute.xlu0 %121
    %123 = vset.pattern.permute.xlu0 0
    %124 = vperm.xlu0 %123, %v31
    %v125 = vpop.permute.xlu0 %124
    %126 = vset.pattern.permute.xlu0 0
    %127 = vperm.xlu0 %126, %v32
    %v128 = vpop.permute.xlu0 %127
    %129 = vset.pattern.permute.xlu0 0
    %130 = vperm.xlu0 %129, %v33
    %v131 = vpop.permute.xlu0 %130
    %132 = vset.pattern.permute.xlu0 0
    %133 = vperm.xlu0 %132, %v34
    %v134 = vpop.permute.xlu0 %133
    %135 = vset.pattern.permute.xlu0 0
    %136 = vperm.xlu0 %135, %v35
    %v137 = vpop.permute.xlu0 %136
    %138 = vset.pattern.permute.xlu0 0
    %139 = vperm.xlu0 %138, %v36
    %v140 = vpop.permute.xlu0 %139
    %141 = vset.pattern.permute.xlu0 0
    %142 = vperm.xlu0 %141, %v37
    %v143 = vpop.permute.xlu0 %142
    %144 = vset.pattern.permute.xlu0 0
    %145 = vperm.xlu0 %144, %v38
    %v146 = vpop.permute.xlu0 %145
    %147 = vset.pattern.permute.xlu0 0
    %148 = vperm.xlu0 %147, %v39
    %v149 = vpop.permute.xlu0 %148
    %150 = vset.pattern.permute.xlu0 0
    %151 = vperm.xlu0 %150, %v40
    %v152 = vpop.permute.xlu0 %151
    %153 = vset.pattern.permute.xlu0 0
    %154 = vperm.xlu0 %153, %v41
    %v155 = vpop.permute.xlu0 %154
    %156 = vset.pattern.permute.xlu0 0
    %157 = vperm.xlu0 %156, %v42
    %v158 = vpop.permute.xlu0 %157
    %159 = vset.pattern.permute.xlu0 0
    %160 = vperm.xlu0 %159, %v43
    %v161 = vpop.permute.xlu0 %160
    %162 = vset.pattern.permute.xlu0 0
    %163 = vperm.xlu0 %162, %v44
    %v164 = vpop.permute.xlu0 %163
    %165 = vset.pattern.permute.xlu0 0
    %166 = vperm.xlu0 %165, %v45
    %v167 = vpop.permute.xlu0 %166
    %168 = vset.pattern.permute.xlu0 0
    %169 = vperm.xlu0 %168, %v46
    %v170 = vpop.permute.xlu0 %169
    %171 = vset.pattern.permute.xlu0 0
    %172 = vperm.xlu0 %171, %v47
    %v173 = vpop.permute.xlu0 %172
    %174 = vset.pattern.permute.xlu0 0
    %175 = vperm.xlu0 %174, %v48
    %v176 = vpop.permute.xlu0 %175
    %177 = vset.pattern.permute.xlu0 0
    %178 = vperm.xlu0 %177, %v49
    %v179 = vpop.permute.xlu0 %178
    %vm180 = vcmp.eq.s32.totalorder %v83, %v86
    %vm181 = vcmp.eq.s32.totalorder %v83, %v89
    %vm182 = vcmp.eq.s32.totalorder %v83, %v92
    %vm183 = vcmp.eq.s32.totalorder %v83, %v95
    %vm184 = vcmp.eq.s32.totalorder %v83, %v98
    %vm185 = vcmp.eq.s32.totalorder %v83, %v101
    %vm186 = vcmp.eq.s32.totalorder %v83, %v104
    %vm187 = vcmp.eq.s32.totalorder %v83, %v107
    %vm188 = vcmp.eq.s32.totalorder %v83, %v110
    %vm189 = vcmp.eq.s32.totalorder %v83, %v113
    %vm190 = vcmp.eq.s32.totalorder %v83, %v116
    %vm191 = vcmp.eq.s32.totalorder %v83, %v119
    %vm192 = vcmp.eq.s32.totalorder %v83, %v122
    %vm193 = vcmp.eq.s32.totalorder %v83, %v125
    %vm194 = vcmp.eq.s32.totalorder %v83, %v128
    %vm195 = vcmp.eq.s32.totalorder %v83, %v131
    %vm196 = vcmp.eq.s32.totalorder %v83, %v134
    %vm197 = vcmp.eq.s32.totalorder %v83, %v137
    %vm198 = vcmp.eq.s32.totalorder %v83, %v140
    %vm199 = vcmp.eq.s32.totalorder %v83, %v143
    %vm200 = vcmp.eq.s32.totalorder %v83, %v146
    %vm201 = vcmp.eq.s32.totalorder %v83, %v149
    %vm202 = vcmp.eq.s32.totalorder %v83, %v152
    %vm203 = vcmp.eq.s32.totalorder %v83, %v155
    %vm204 = vcmp.eq.s32.totalorder %v83, %v158
    %vm205 = vcmp.eq.s32.totalorder %v83, %v161
    %vm206 = vcmp.eq.s32.totalorder %v83, %v164
    %vm207 = vcmp.eq.s32.totalorder %v83, %v167
    %vm208 = vcmp.eq.s32.totalorder %v83, %v170
    %vm209 = vcmp.eq.s32.totalorder %v83, %v173
    %vm210 = vcmp.eq.s32.totalorder %v83, %v176
    %vm211 = vcmp.eq.s32.totalorder %v83, %v179
    %v212 = vsel %vm180, 1, 0
    %v213 = vsel %vm181, 1, 0
    %v214 = vsel %vm182, 1, 0
    %v215 = vsel %vm183, 1, 0
    %v216 = vsel %vm184, 1, 0
    %v217 = vsel %vm185, 1, 0
    %v218 = vsel %vm186, 1, 0
    %v219 = vsel %vm187, 1, 0
    %v220 = vsel %vm188, 1, 0
    %v221 = vsel %vm189, 1, 0
    %v222 = vsel %vm190, 1, 0
    %v223 = vsel %vm191, 1, 0
    %v224 = vsel %vm192, 1, 0
    %v225 = vsel %vm193, 1, 0
    %v226 = vsel %vm194, 1, 0
    %v227 = vsel %vm195, 1, 0
    %v228 = vsel %vm196, 1, 0
    %v229 = vsel %vm197, 1, 0
    %v230 = vsel %vm198, 1, 0
    %v231 = vsel %vm199, 1, 0
    %v232 = vsel %vm200, 1, 0
    %v233 = vsel %vm201, 1, 0
    %v234 = vsel %vm202, 1, 0
    %v235 = vsel %vm203, 1, 0
    %v236 = vsel %vm204, 1, 0
    %v237 = vsel %vm205, 1, 0
    %v238 = vsel %vm206, 1, 0
    %v239 = vsel %vm207, 1, 0
    %v240 = vsel %vm208, 1, 0
    %v241 = vsel %vm209, 1, 0
    %v242 = vsel %vm210, 1, 0
    %v243 = vsel %vm211, 1, 0
    %v244 = vcvt.s32.f32 %v212
    %v245 = vcvt.s32.f32 %v213
    %v246 = vcvt.s32.f32 %v214
    %v247 = vcvt.s32.f32 %v215
    %v248 = vcvt.s32.f32 %v216
    %v249 = vcvt.s32.f32 %v217
    %v250 = vcvt.s32.f32 %v218
    %v251 = vcvt.s32.f32 %v219
    %v252 = vcvt.s32.f32 %v220
    %v253 = vcvt.s32.f32 %v221
    %v254 = vcvt.s32.f32 %v222
    %v255 = vcvt.s32.f32 %v223
    %v256 = vcvt.s32.f32 %v224
    %v257 = vcvt.s32.f32 %v225
    %v258 = vcvt.s32.f32 %v226
    %v259 = vcvt.s32.f32 %v227
    %v260 = vcvt.s32.f32 %v228
    %v261 = vcvt.s32.f32 %v229
    %v262 = vcvt.s32.f32 %v230
    %v263 = vcvt.s32.f32 %v231
    %v264 = vcvt.s32.f32 %v232
    %v265 = vcvt.s32.f32 %v233
    %v266 = vcvt.s32.f32 %v234
    %v267 = vcvt.s32.f32 %v235
    %v268 = vcvt.s32.f32 %v236
    %v269 = vcvt.s32.f32 %v237
    %v270 = vcvt.s32.f32 %v238
    %v271 = vcvt.s32.f32 %v239
    %v272 = vcvt.s32.f32 %v240
    %v273 = vcvt.s32.f32 %v241
    %v274 = vcvt.s32.f32 %v242
    %v275 = vcvt.s32.f32 %v243
    %v276 = vld [vmem:[%s2] sm:$0xff]
    %v277 = vld [vmem:[%s2 + $0x8] sm:$0xff]
    %v278 = vld [vmem:[%s2 + $0x10] sm:$0xff]
    %v279 = vld [vmem:[%s2 + $0x18] sm:$0xff]
    %v280 = vld [vmem:[%s2 + $0x20] sm:$0xff]
    %v281 = vld [vmem:[%s2 + $0x28] sm:$0xff]
    %v282 = vld [vmem:[%s2 + $0x30] sm:$0xff]
    %v283 = vld [vmem:[%s2 + $0x38] sm:$0xff]
    %v284 = vld [vmem:[%s2 + $0x40] sm:$0xff]
    %v285 = vld [vmem:[%s2 + $0x48] sm:$0xff]
    %v286 = vld [vmem:[%s2 + $0x50] sm:$0xff]
    %v287 = vld [vmem:[%s2 + $0x58] sm:$0xff]
    %v288 = vld [vmem:[%s2 + $0x60] sm:$0xff]
    %v289 = vld [vmem:[%s2 + $0x68] sm:$0xff]
    %v290 = vld [vmem:[%s2 + $0x70] sm:$0xff]
    %v291 = vld [vmem:[%s2 + $0x78] sm:$0xff]
    %292 = vmatprep.subr.mxu0 0.0
    %293 = vmatpush1.msra.mxu0 %v276
    %294 = vmatprep.subr.mxu0 0.0
    %295 = vmatpush1.msra.mxu0 %v277
    %296 = vmatprep.subr.mxu0 0.0
    %297 = vmatpush1.msra.mxu0 %v278
    %298 = vmatprep.subr.mxu0 0.0
    %299 = vmatpush1.msra.mxu0 %v279
    %300 = vmatprep.subr.mxu0 0.0
    %301 = vmatpush1.msra.mxu0 %v280
    %302 = vmatprep.subr.mxu0 0.0
    %303 = vmatpush1.msra.mxu0 %v281
    %304 = vmatprep.subr.mxu0 0.0
    %305 = vmatpush1.msra.mxu0 %v282
    %306 = vmatprep.subr.mxu0 0.0
    %307 = vmatpush1.msra.mxu0 %v283
    %308 = vmatprep.subr.mxu0 0.0
    %309 = vmatpush1.msra.mxu0 %v284
    %310 = vmatprep.subr.mxu0 0.0
    %311 = vmatpush1.msra.mxu0 %v285
    %312 = vmatprep.subr.mxu0 0.0
    %313 = vmatpush1.msra.mxu0 %v286
    %314 = vmatprep.subr.mxu0 0.0
    %315 = vmatpush1.msra.mxu0 %v287
    %316 = vmatprep.subr.mxu0 0.0
    %317 = vmatpush1.msra.mxu0 %v288
    %318 = vmatprep.subr.mxu0 0.0
    %319 = vmatpush1.msra.mxu0 %v289
    %320 = vmatprep.subr.mxu0 0.0
    %321 = vmatpush1.msra.mxu0 %v290
    %322 = vmatprep.subr.mxu0 0.0
    %323 = vmatpush1.msra.mxu0 %v291
    %324 = vmatprep.subr.mxu0 0.0
    %325 = vmatpush1.msra.mxu0 0.0
    %326 = vmatprep.subr.mxu0 0.0
    %327 = vmatpush1.msra.mxu0 0.0
    %328 = vmatprep.subr.mxu0 0.0
    %329 = vmatpush1.msra.mxu0 0.0
    %330 = vmatprep.subr.mxu0 0.0
    %331 = vmatpush1.msra.mxu0 0.0
    %332 = vmatprep.subr.mxu0 0.0
    %333 = vmatpush1.msra.mxu0 0.0
    %334 = vmatprep.subr.mxu0 0.0
    %335 = vmatpush1.msra.mxu0 0.0
    %336 = vmatprep.subr.mxu0 0.0
    %337 = vmatpush1.msra.mxu0 0.0
    %338 = vmatprep.subr.mxu0 0.0
    %339 = vmatpush1.msra.mxu0 0.0
    %340 = vmatprep.subr.mxu0 0.0
    %341 = vmatpush1.msra.mxu0 0.0
    %342 = vmatprep.subr.mxu0 0.0
    %343 = vmatpush1.msra.mxu0 0.0
    %344 = vmatprep.subr.mxu0 0.0
    %345 = vmatpush1.msra.mxu0 0.0
    %346 = vmatprep.subr.mxu0 0.0
    %347 = vmatpush1.msra.mxu0 0.0
    %348 = vmatprep.subr.mxu0 0.0
    %349 = vmatpush1.msra.mxu0 0.0
    %350 = vmatprep.subr.mxu0 0.0
    %351 = vmatpush1.msra.mxu0 0.0
    %352 = vmatprep.subr.mxu0 0.0
    %353 = vmatpush1.msra.mxu0 0.0
    %354 = vmatprep.subr.mxu0 0.0
    %355 = vmatpush1.msra.mxu0 0.0
    %356 = vmatprep.mubr.f32.mxu0 0.0
    %357 = vmatmul.mubr.f32.gmra.mrb[0].mxu0 %v244
    %v358 = vpop.f32.mrb[0].mxu0
    %v359 = vadd.f32 0.0, %v358
    %v360 = vpop.f32.mrb[0].mxu0
    %361 = vmatprep.mubr.f32.mxu0 0.0
    %362 = vmatmul.mubr.f32.gmra.mrb[0].mxu0 %v245
    %v363 = vpop.f32.mrb[0].mxu0
    %v364 = vadd.f32 0.0, %v363
    %v365 = vpop.f32.mrb[0].mxu0
    %366 = vmatprep.mubr.f32.mxu0 0.0
    %367 = vmatmul.mubr.f32.gmra.mrb[0].mxu0 %v246
    %v368 = vpop.f32.mrb[0].mxu0
    %v369 = vadd.f32 0.0, %v368
    %v370 = vpop.f32.mrb[0].mxu0
    %371 = vmatprep.mubr.f32.mxu0 0.0
    %372 = vmatmul.mubr.f32.gmra.mrb[0].mxu0 %v247
    %v373 = vpop.f32.mrb[0].mxu0
    %v374 = vadd.f32 0.0, %v373
    %v375 = vpop.f32.mrb[0].mxu0
    %376 = vmatprep.mubr.f32.mxu0 0.0
    %377 = vmatmul.mubr.f32.gmra.mrb[0].mxu0 %v248
    %v378 = vpop.f32.mrb[0].mxu0
    %v379 = vadd.f32 0.0, %v378
    %v380 = vpop.f32.mrb[0].mxu0
    %381 = vmatprep.mubr.f32.mxu0 0.0
    %382 = vmatmul.mubr.f32.gmra.mrb[0].mxu0 %v249
    %v383 = vpop.f32.mrb[0].mxu0
    %v384 = vadd.f32 0.0, %v383
    %v385 = vpop.f32.mrb[0].mxu0
    %386 = vmatprep.mubr.f32.mxu0 0.0
    %387 = vmatmul.mubr.f32.gmra.mrb[0].mxu0 %v250
    %v388 = vpop.f32.mrb[0].mxu0
    %v389 = vadd.f32 0.0, %v388
    %v390 = vpop.f32.mrb[0].mxu0
    %391 = vmatprep.mubr.f32.mxu0 0.0
    %392 = vmatmul.mubr.f32.gmra.mrb[0].mxu0 %v251
    %v393 = vpop.f32.mrb[0].mxu0
    %v394 = vadd.f32 0.0, %v393
    %v395 = vpop.f32.mrb[0].mxu0
    %396 = vmatprep.mubr.f32.mxu0 0.0
    %397 = vmatmul.mubr.f32.gmra.mrb[0].mxu0 %v252
    %v398 = vpop.f32.mrb[0].mxu0
    %v399 = vadd.f32 0.0, %v398
    %v400 = vpop.f32.mrb[0].mxu0
    %401 = vmatprep.mubr.f32.mxu0 0.0
    %402 = vmatmul.mubr.f32.gmra.mrb[0].mxu0 %v253
    %v403 = vpop.f32.mrb[0].mxu0
    %v404 = vadd.f32 0.0, %v403
    %v405 = vpop.f32.mrb[0].mxu0
    %406 = vmatprep.mubr.f32.mxu0 0.0
    %407 = vmatmul.mubr.f32.gmra.mrb[0].mxu0 %v254
    %v408 = vpop.f32.mrb[0].mxu0
    %v409 = vadd.f32 0.0, %v408
    %v410 = vpop.f32.mrb[0].mxu0
    %411 = vmatprep.mubr.f32.mxu0 0.0
    %412 = vmatmul.mubr.f32.gmra.mrb[0].mxu0 %v255
    %v413 = vpop.f32.mrb[0].mxu0
    %v414 = vadd.f32 0.0, %v413
    %v415 = vpop.f32.mrb[0].mxu0
    %416 = vmatprep.mubr.f32.mxu0 0.0
    %417 = vmatmul.mubr.f32.gmra.mrb[0].mxu0 %v256
    %v418 = vpop.f32.mrb[0].mxu0
    %v419 = vadd.f32 0.0, %v418
    %v420 = vpop.f32.mrb[0].mxu0
    %421 = vmatprep.mubr.f32.mxu0 0.0
    %422 = vmatmul.mubr.f32.gmra.mrb[0].mxu0 %v257
    %v423 = vpop.f32.mrb[0].mxu0
    %v424 = vadd.f32 0.0, %v423
    %v425 = vpop.f32.mrb[0].mxu0
    %426 = vmatprep.mubr.f32.mxu0 0.0
    %427 = vmatmul.mubr.f32.gmra.mrb[0].mxu0 %v258
    %v428 = vpop.f32.mrb[0].mxu0
    %v429 = vadd.f32 0.0, %v428
    %v430 = vpop.f32.mrb[0].mxu0
    %431 = vmatprep.mubr.f32.mxu0 0.0
    %432 = vmatmul.mubr.f32.gmra.mrb[0].mxu0 %v259
    %v433 = vpop.f32.mrb[0].mxu0
    %v434 = vadd.f32 0.0, %v433
    %v435 = vpop.f32.mrb[0].mxu0
    %436 = vmatprep.mubr.f32.mxu0 0.0
    %437 = vmatmul.mubr.f32.gmra.mrb[0].mxu0 %v260
    %v438 = vpop.f32.mrb[0].mxu0
    %v439 = vadd.f32 0.0, %v438
    %v440 = vpop.f32.mrb[0].mxu0
    %441 = vmatprep.mubr.f32.mxu0 0.0
    %442 = vmatmul.mubr.f32.gmra.mrb[0].mxu0 %v261
    %v443 = vpop.f32.mrb[0].mxu0
    %v444 = vadd.f32 0.0, %v443
    %v445 = vpop.f32.mrb[0].mxu0
    %446 = vmatprep.mubr.f32.mxu0 0.0
    %447 = vmatmul.mubr.f32.gmra.mrb[0].mxu0 %v262
    %v448 = vpop.f32.mrb[0].mxu0
    %v449 = vadd.f32 0.0, %v448
    %v450 = vpop.f32.mrb[0].mxu0
    %451 = vmatprep.mubr.f32.mxu0 0.0
    %452 = vmatmul.mubr.f32.gmra.mrb[0].mxu0 %v263
    %v453 = vpop.f32.mrb[0].mxu0
    %v454 = vadd.f32 0.0, %v453
    %v455 = vpop.f32.mrb[0].mxu0
    %456 = vmatprep.mubr.f32.mxu0 0.0
    %457 = vmatmul.mubr.f32.gmra.mrb[0].mxu0 %v264
    %v458 = vpop.f32.mrb[0].mxu0
    %v459 = vadd.f32 0.0, %v458
    %v460 = vpop.f32.mrb[0].mxu0
    %461 = vmatprep.mubr.f32.mxu0 0.0
    %462 = vmatmul.mubr.f32.gmra.mrb[0].mxu0 %v265
    %v463 = vpop.f32.mrb[0].mxu0
    %v464 = vadd.f32 0.0, %v463
    %v465 = vpop.f32.mrb[0].mxu0
    %466 = vmatprep.mubr.f32.mxu0 0.0
    %467 = vmatmul.mubr.f32.gmra.mrb[0].mxu0 %v266
    %v468 = vpop.f32.mrb[0].mxu0
    %v469 = vadd.f32 0.0, %v468
    %v470 = vpop.f32.mrb[0].mxu0
    %471 = vmatprep.mubr.f32.mxu0 0.0
    %472 = vmatmul.mubr.f32.gmra.mrb[0].mxu0 %v267
    %v473 = vpop.f32.mrb[0].mxu0
    %v474 = vadd.f32 0.0, %v473
    %v475 = vpop.f32.mrb[0].mxu0
    %476 = vmatprep.mubr.f32.mxu0 0.0
    %477 = vmatmul.mubr.f32.gmra.mrb[0].mxu0 %v268
    %v478 = vpop.f32.mrb[0].mxu0
    %v479 = vadd.f32 0.0, %v478
    %v480 = vpop.f32.mrb[0].mxu0
    %481 = vmatprep.mubr.f32.mxu0 0.0
    %482 = vmatmul.mubr.f32.gmra.mrb[0].mxu0 %v269
    %v483 = vpop.f32.mrb[0].mxu0
    %v484 = vadd.f32 0.0, %v483
    %v485 = vpop.f32.mrb[0].mxu0
    %486 = vmatprep.mubr.f32.mxu0 0.0
    %487 = vmatmul.mubr.f32.gmra.mrb[0].mxu0 %v270
    %v488 = vpop.f32.mrb[0].mxu0
    %v489 = vadd.f32 0.0, %v488
    %v490 = vpop.f32.mrb[0].mxu0
    %491 = vmatprep.mubr.f32.mxu0 0.0
    %492 = vmatmul.mubr.f32.gmra.mrb[0].mxu0 %v271
    %v493 = vpop.f32.mrb[0].mxu0
    %v494 = vadd.f32 0.0, %v493
    %v495 = vpop.f32.mrb[0].mxu0
    %496 = vmatprep.mubr.f32.mxu0 0.0
    %497 = vmatmul.mubr.f32.gmra.mrb[0].mxu0 %v272
    %v498 = vpop.f32.mrb[0].mxu0
    %v499 = vadd.f32 0.0, %v498
    %v500 = vpop.f32.mrb[0].mxu0
    %501 = vmatprep.mubr.f32.mxu0 0.0
    %502 = vmatmul.mubr.f32.gmra.mrb[0].mxu0 %v273
    %v503 = vpop.f32.mrb[0].mxu0
    %v504 = vadd.f32 0.0, %v503
    %v505 = vpop.f32.mrb[0].mxu0
    %506 = vmatprep.mubr.f32.mxu0 0.0
    %507 = vmatmul.mubr.f32.gmra.mrb[0].mxu0 %v274
    %v508 = vpop.f32.mrb[0].mxu0
    %v509 = vadd.f32 0.0, %v508
    %v510 = vpop.f32.mrb[0].mxu0
    %511 = vmatprep.mubr.f32.mxu0 0.0
    %512 = vmatmul.mubr.f32.gmra.mrb[0].mxu0 %v275
    %v513 = vpop.f32.mrb[0].mxu0
    %v514 = vadd.f32 0.0, %v513
    %v515 = vpop.f32.mrb[0].mxu0
    %516 = vdwg.mxu0
    %517 = vst [vmem:[#allocation2] sm:$0xff] %v359
    %518 = vst [vmem:[#allocation2 + $0x8] sm:$0xff] %v364
    %519 = vst [vmem:[#allocation2 + $0x10] sm:$0xff] %v369
    %520 = vst [vmem:[#allocation2 + $0x18] sm:$0xff] %v374
    %521 = vst [vmem:[#allocation2 + $0x20] sm:$0xff] %v379
    %522 = vst [vmem:[#allocation2 + $0x28] sm:$0xff] %v384
    %523 = vst [vmem:[#allocation2 + $0x30] sm:$0xff] %v389
    %524 = vst [vmem:[#allocation2 + $0x38] sm:$0xff] %v394
    %525 = vst [vmem:[#allocation2 + $0x40] sm:$0xff] %v399
    %526 = vst [vmem:[#allocation2 + $0x48] sm:$0xff] %v404
    %527 = vst [vmem:[#allocation2 + $0x50] sm:$0xff] %v409
    %528 = vst [vmem:[#allocation2 + $0x58] sm:$0xff] %v414
    %529 = vst [vmem:[#allocation2 + $0x60] sm:$0xff] %v419
    %530 = vst [vmem:[#allocation2 + $0x68] sm:$0xff] %v424
    %531 = vst [vmem:[#allocation2 + $0x70] sm:$0xff] %v429
    %532 = vst [vmem:[#allocation2 + $0x78] sm:$0xff] %v434
    %533 = vst [vmem:[#allocation2 + $0x80] sm:$0xff] %v439
    %534 = vst [vmem:[#allocation2 + $0x88] sm:$0xff] %v444
    %535 = vst [vmem:[#allocation2 + $0x90] sm:$0xff] %v449
    %536 = vst [vmem:[#allocation2 + $0x98] sm:$0xff] %v454
    %537 = vst [vmem:[#allocation2 + $0xa0] sm:$0xff] %v459
    %538 = vst [vmem:[#allocation2 + $0xa8] sm:$0xff] %v464
    %539 = vst [vmem:[#allocation2 + $0xb0] sm:$0xff] %v469
    %540 = vst [vmem:[#allocation2 + $0xb8] sm:$0xff] %v474
    %541 = vst [vmem:[#allocation2 + $0xc0] sm:$0xff] %v479
    %542 = vst [vmem:[#allocation2 + $0xc8] sm:$0xff] %v484
    %543 = vst [vmem:[#allocation2 + $0xd0] sm:$0xff] %v489
    %544 = vst [vmem:[#allocation2 + $0xd8] sm:$0xff] %v494
    %545 = vst [vmem:[#allocation2 + $0xe0] sm:$0xff] %v499
    %546 = vst [vmem:[#allocation2 + $0xe8] sm:$0xff] %v504
    %547 = vst [vmem:[#allocation2 + $0xf0] sm:$0xff] %v509
    %548 = vst [vmem:[#allocation2 + $0xf8] sm:$0xff] %v514
    %vm549 = vcmp.lt.s32.totalorder %v83, 65
    %s550 = smul.u32 0, 256
    %v551 = vlaneseq
    %v552 = vshrl.u32 %v551, 7
    %v553 = vadd.s32 %v552, 8
    %v554 = vadd.s32 %v552, 16
    %v555 = vadd.s32 %v552, 24
    %v556 = vadd.s32 %v552, 32
    %v557 = vadd.s32 %v552, 40
    %v558 = vadd.s32 %v552, 48
    %v559 = vadd.s32 %v552, 56
    %v560 = vadd.s32 %v552, 64
    %v561 = vadd.s32 %v552, 72
    %v562 = vadd.s32 %v552, 80
    %v563 = vadd.s32 %v552, 88
    %v564 = vadd.s32 %v552, 96
    %v565 = vadd.s32 %v552, 104
    %v566 = vadd.s32 %v552, 112
    %v567 = vadd.s32 %v552, 120
    %v568 = vadd.s32 %v552, 128
    %v569 = vadd.s32 %v552, 136
    %v570 = vadd.s32 %v552, 144
    %v571 = vadd.s32 %v552, 152
    %v572 = vadd.s32 %v552, 160
    %v573 = vadd.s32 %v552, 168
    %v574 = vadd.s32 %v552, 176
    %v575 = vadd.s32 %v552, 184
    %v576 = vadd.s32 %v552, 192
    %v577 = vadd.s32 %v552, 200
    %v578 = vadd.s32 %v552, 208
    %v579 = vadd.s32 %v552, 216
    %v580 = vadd.s32 %v552, 224
    %v581 = vadd.s32 %v552, 232
    %v582 = vadd.s32 %v552, 240
    %v583 = vadd.s32 %v552, 248
    %v584 = vstv %s550
    %v585 = vadd.s32 %v584, %v552
    %v586 = vadd.s32 %v584, %v553
    %v587 = vadd.s32 %v584, %v554
    %v588 = vadd.s32 %v584, %v555
    %v589 = vadd.s32 %v584, %v556
    %v590 = vadd.s32 %v584, %v557
    %v591 = vadd.s32 %v584, %v558
    %v592 = vadd.s32 %v584, %v559
    %v593 = vadd.s32 %v584, %v560
    %v594 = vadd.s32 %v584, %v561
    %v595 = vadd.s32 %v584, %v562
    %v596 = vadd.s32 %v584, %v563
    %v597 = vadd.s32 %v584, %v564
    %v598 = vadd.s32 %v584, %v565
    %v599 = vadd.s32 %v584, %v566
    %v600 = vadd.s32 %v584, %v567
    %v601 = vadd.s32 %v584, %v568
    %v602 = vadd.s32 %v584, %v569
    %v603 = vadd.s32 %v584, %v570
    %v604 = vadd.s32 %v584, %v571
    %v605 = vadd.s32 %v584, %v572
    %v606 = vadd.s32 %v584, %v573
    %v607 = vadd.s32 %v584, %v574
    %v608 = vadd.s32 %v584, %v575
    %v609 = vadd.s32 %v584, %v576
    %v610 = vadd.s32 %v584, %v577
    %v611 = vadd.s32 %v584, %v578
    %v612 = vadd.s32 %v584, %v579
    %v613 = vadd.s32 %v584, %v580
    %v614 = vadd.s32 %v584, %v581
    %v615 = vadd.s32 %v584, %v582
    %v616 = vadd.s32 %v584, %v583
    %vm617 = vcmp.lt.s32.totalorder %v585, 16
    %vm618 = vcmp.lt.s32.totalorder %v586, 16
    %vm619 = vcmp.lt.s32.totalorder %v587, 16
    %vm620 = vcmp.lt.s32.totalorder %v588, 16
    %vm621 = vcmp.lt.s32.totalorder %v589, 16
    %vm622 = vcmp.lt.s32.totalorder %v590, 16
    %vm623 = vcmp.lt.s32.totalorder %v591, 16
    %vm624 = vcmp.lt.s32.totalorder %v592, 16
    %vm625 = vcmp.lt.s32.totalorder %v593, 16
    %vm626 = vcmp.lt.s32.totalorder %v594, 16
    %vm627 = vcmp.lt.s32.totalorder %v595, 16
    %vm628 = vcmp.lt.s32.totalorder %v596, 16
    %vm629 = vcmp.lt.s32.totalorder %v597, 16
    %vm630 = vcmp.lt.s32.totalorder %v598, 16
    %vm631 = vcmp.lt.s32.totalorder %v599, 16
    %vm632 = vcmp.lt.s32.totalorder %v600, 16
    %vm633 = vcmp.lt.s32.totalorder %v601, 16
    %vm634 = vcmp.lt.s32.totalorder %v602, 16
    %vm635 = vcmp.lt.s32.totalorder %v603, 16
    %vm636 = vcmp.lt.s32.totalorder %v604, 16
    %vm637 = vcmp.lt.s32.totalorder %v605, 16
    %vm638 = vcmp.lt.s32.totalorder %v606, 16
    %vm639 = vcmp.lt.s32.totalorder %v607, 16
    %vm640 = vcmp.lt.s32.totalorder %v608, 16
    %vm641 = vcmp.lt.s32.totalorder %v609, 16
    %vm642 = vcmp.lt.s32.totalorder %v610, 16
    %vm643 = vcmp.lt.s32.totalorder %v611, 16
    %vm644 = vcmp.lt.s32.totalorder %v612, 16
    %vm645 = vcmp.lt.s32.totalorder %v613, 16
    %vm646 = vcmp.lt.s32.totalorder %v614, 16
    %vm647 = vcmp.lt.s32.totalorder %v615, 16
    %vm648 = vcmp.lt.s32.totalorder %v616, 16
    %v649 = vsel %vm549, %v359, -1e+30
    %v650 = vsel %vm549, %v364, -1e+30
    %v651 = vsel %vm549, %v369, -1e+30
    %v652 = vsel %vm549, %v374, -1e+30
    %v653 = vsel %vm549, %v379, -1e+30
    %v654 = vsel %vm549, %v384, -1e+30
    %v655 = vsel %vm549, %v389, -1e+30
    %v656 = vsel %vm549, %v394, -1e+30
    %v657 = vsel %vm549, %v399, -1e+30
    %v658 = vsel %vm549, %v404, -1e+30
    %v659 = vsel %vm549, %v409, -1e+30
    %v660 = vsel %vm549, %v414, -1e+30
    %v661 = vsel %vm549, %v419, -1e+30
    %v662 = vsel %vm549, %v424, -1e+30
    %v663 = vsel %vm549, %v429, -1e+30
    %v664 = vsel %vm549, %v434, -1e+30
    %v665 = vsel %vm549, %v439, -1e+30
    %v666 = vsel %vm549, %v444, -1e+30
    %v667 = vsel %vm549, %v449, -1e+30
    %v668 = vsel %vm549, %v454, -1e+30
    %v669 = vsel %vm549, %v459, -1e+30
    %v670 = vsel %vm549, %v464, -1e+30
    %v671 = vsel %vm549, %v469, -1e+30
    %v672 = vsel %vm549, %v474, -1e+30
    %v673 = vsel %vm549, %v479, -1e+30
    %v674 = vsel %vm549, %v484, -1e+30
    %v675 = vsel %vm549, %v489, -1e+30
    %v676 = vsel %vm549, %v494, -1e+30
    %v677 = vsel %vm549, %v499, -1e+30
    %v678 = vsel %vm549, %v504, -1e+30
    %v679 = vsel %vm549, %v509, -1e+30
    %v680 = vsel %vm549, %v514, -1e+30
    %681 = vmax.xlane.f32.xlu0 %v649
    %v682 = vpop.xlane.xlu0 %681
    %683 = vmax.xlane.f32.xlu0 %v650
    %v684 = vpop.xlane.xlu0 %683
    %685 = vmax.xlane.f32.xlu0 %v651
    %v686 = vpop.xlane.xlu0 %685
    %687 = vmax.xlane.f32.xlu0 %v652
    %v688 = vpop.xlane.xlu0 %687
    %689 = vmax.xlane.f32.xlu0 %v653
    %v690 = vpop.xlane.xlu0 %689
    %691 = vmax.xlane.f32.xlu0 %v654
    %v692 = vpop.xlane.xlu0 %691
    %693 = vmax.xlane.f32.xlu0 %v655
    %v694 = vpop.xlane.xlu0 %693
    %695 = vmax.xlane.f32.xlu0 %v656
    %v696 = vpop.xlane.xlu0 %695
    %697 = vmax.xlane.f32.xlu0 %v657
    %v698 = vpop.xlane.xlu0 %697
    %699 = vmax.xlane.f32.xlu0 %v658
    %v700 = vpop.xlane.xlu0 %699
    %701 = vmax.xlane.f32.xlu0 %v659
    %v702 = vpop.xlane.xlu0 %701
    %703 = vmax.xlane.f32.xlu0 %v660
    %v704 = vpop.xlane.xlu0 %703
    %705 = vmax.xlane.f32.xlu0 %v661
    %v706 = vpop.xlane.xlu0 %705
    %707 = vmax.xlane.f32.xlu0 %v662
    %v708 = vpop.xlane.xlu0 %707
    %709 = vmax.xlane.f32.xlu0 %v663
    %v710 = vpop.xlane.xlu0 %709
    %711 = vmax.xlane.f32.xlu0 %v664
    %v712 = vpop.xlane.xlu0 %711
    %713 = vmax.xlane.f32.xlu0 %v665
    %v714 = vpop.xlane.xlu0 %713
    %715 = vmax.xlane.f32.xlu0 %v666
    %v716 = vpop.xlane.xlu0 %715
    %717 = vmax.xlane.f32.xlu0 %v667
    %v718 = vpop.xlane.xlu0 %717
    %719 = vmax.xlane.f32.xlu0 %v668
    %v720 = vpop.xlane.xlu0 %719
    %721 = vmax.xlane.f32.xlu0 %v669
    %v722 = vpop.xlane.xlu0 %721
    %723 = vmax.xlane.f32.xlu0 %v670
    %v724 = vpop.xlane.xlu0 %723
    %725 = vmax.xlane.f32.xlu0 %v671
    %v726 = vpop.xlane.xlu0 %725
    %727 = vmax.xlane.f32.xlu0 %v672
    %v728 = vpop.xlane.xlu0 %727
    %729 = vmax.xlane.f32.xlu0 %v673
    %v730 = vpop.xlane.xlu0 %729
    %731 = vmax.xlane.f32.xlu0 %v674
    %v732 = vpop.xlane.xlu0 %731
    %733 = vmax.xlane.f32.xlu0 %v675
    %v734 = vpop.xlane.xlu0 %733
    %735 = vmax.xlane.f32.xlu0 %v676
    %v736 = vpop.xlane.xlu0 %735
    %737 = vmax.xlane.f32.xlu0 %v677
    %v738 = vpop.xlane.xlu0 %737
    %739 = vmax.xlane.f32.xlu0 %v678
    %v740 = vpop.xlane.xlu0 %739
    %741 = vmax.xlane.f32.xlu0 %v679
    %v742 = vpop.xlane.xlu0 %741
    %743 = vmax.xlane.f32.xlu0 %v680
    %v744 = vpop.xlane.xlu0 %743
    %v745 = vsub.f32 %v649, %v682
    %v746 = vsub.f32 %v650, %v684
    %v747 = vsub.f32 %v651, %v686
    %v748 = vsub.f32 %v652, %v688
    %v749 = vsub.f32 %v653, %v690
    %v750 = vsub.f32 %v654, %v692
    %v751 = vsub.f32 %v655, %v694
    %v752 = vsub.f32 %v656, %v696
    %v753 = vsub.f32 %v657, %v698
    %v754 = vsub.f32 %v658, %v700
    %v755 = vsub.f32 %v659, %v702
    %v756 = vsub.f32 %v660, %v704
    %v757 = vsub.f32 %v661, %v706
    %v758 = vsub.f32 %v662, %v708
    %v759 = vsub.f32 %v663, %v710
    %v760 = vsub.f32 %v664, %v712
    %v761 = vsub.f32 %v665, %v714
    %v762 = vsub.f32 %v666, %v716
    %v763 = vsub.f32 %v667, %v718
    %v764 = vsub.f32 %v668, %v720
    %v765 = vsub.f32 %v669, %v722
    %v766 = vsub.f32 %v670, %v724
    %v767 = vsub.f32 %v671, %v726
    %v768 = vsub.f32 %v672, %v728
    %v769 = vsub.f32 %v673, %v730
    %v770 = vsub.f32 %v674, %v732
    %v771 = vsub.f32 %v675, %v734
    %v772 = vsub.f32 %v676, %v736
    %v773 = vsub.f32 %v677, %v738
    %v774 = vsub.f32 %v678, %v740
    %v775 = vsub.f32 %v679, %v742
    %v776 = vsub.f32 %v680, %v744
    %v777 = vmul.f32 %v745, 1.442695
    %v778 = vpow.pop %v777
    %v779 = vmul.f32 %v746, 1.442695
    %v780 = vpow.pop %v779
    %v781 = vmul.f32 %v747, 1.442695
    %v782 = vpow.pop %v781
    %v783 = vmul.f32 %v748, 1.442695
    %v784 = vpow.pop %v783
    %v785 = vmul.f32 %v749, 1.442695
    %v786 = vpow.pop %v785
    %v787 = vmul.f32 %v750, 1.442695
    %v788 = vpow.pop %v787
    %v789 = vmul.f32 %v751, 1.442695
    %v790 = vpow.pop %v789
    %v791 = vmul.f32 %v752, 1.442695
    %v792 = vpow.pop %v791
    %v793 = vmul.f32 %v753, 1.442695
    %v794 = vpow.pop %v793
    %v795 = vmul.f32 %v754, 1.442695
    %v796 = vpow.pop %v795
    %v797 = vmul.f32 %v755, 1.442695
    %v798 = vpow.pop %v797
    %v799 = vmul.f32 %v756, 1.442695
    %v800 = vpow.pop %v799
    %v801 = vmul.f32 %v757, 1.442695
    %v802 = vpow.pop %v801
    %v803 = vmul.f32 %v758, 1.442695
    %v804 = vpow.pop %v803
    %v805 = vmul.f32 %v759, 1.442695
    %v806 = vpow.pop %v805
    %v807 = vmul.f32 %v760, 1.442695
    %v808 = vpow.pop %v807
    %v809 = vmul.f32 %v761, 1.442695
    %v810 = vpow.pop %v809
    %v811 = vmul.f32 %v762, 1.442695
    %v812 = vpow.pop %v811
    %v813 = vmul.f32 %v763, 1.442695
    %v814 = vpow.pop %v813
    %v815 = vmul.f32 %v764, 1.442695
    %v816 = vpow.pop %v815
    %v817 = vmul.f32 %v765, 1.442695
    %v818 = vpow.pop %v817
    %v819 = vmul.f32 %v766, 1.442695
    %v820 = vpow.pop %v819
    %v821 = vmul.f32 %v767, 1.442695
    %v822 = vpow.pop %v821
    %v823 = vmul.f32 %v768, 1.442695
    %v824 = vpow.pop %v823
    %v825 = vmul.f32 %v769, 1.442695
    %v826 = vpow.pop %v825
    %v827 = vmul.f32 %v770, 1.442695
    %v828 = vpow.pop %v827
    %v829 = vmul.f32 %v771, 1.442695
    %v830 = vpow.pop %v829
    %v831 = vmul.f32 %v772, 1.442695
    %v832 = vpow.pop %v831
    %v833 = vmul.f32 %v773, 1.442695
    %v834 = vpow.pop %v833
    %v835 = vmul.f32 %v774, 1.442695
    %v836 = vpow.pop %v835
    %v837 = vmul.f32 %v775, 1.442695
    %v838 = vpow.pop %v837
    %v839 = vmul.f32 %v776, 1.442695
    %v840 = vpow.pop %v839
    %841 = vadd.xlane.f32.xlu0 %v778
    %v842 = vpop.xlane.xlu0 %841
    %843 = vadd.xlane.f32.xlu0 %v780
    %v844 = vpop.xlane.xlu0 %843
    %845 = vadd.xlane.f32.xlu0 %v782
    %v846 = vpop.xlane.xlu0 %845
    %847 = vadd.xlane.f32.xlu0 %v784
    %v848 = vpop.xlane.xlu0 %847
    %849 = vadd.xlane.f32.xlu0 %v786
    %v850 = vpop.xlane.xlu0 %849
    %851 = vadd.xlane.f32.xlu0 %v788
    %v852 = vpop.xlane.xlu0 %851
    %853 = vadd.xlane.f32.xlu0 %v790
    %v854 = vpop.xlane.xlu0 %853
    %855 = vadd.xlane.f32.xlu0 %v792
    %v856 = vpop.xlane.xlu0 %855
    %857 = vadd.xlane.f32.xlu0 %v794
    %v858 = vpop.xlane.xlu0 %857
    %859 = vadd.xlane.f32.xlu0 %v796
    %v860 = vpop.xlane.xlu0 %859
    %861 = vadd.xlane.f32.xlu0 %v798
    %v862 = vpop.xlane.xlu0 %861
    %863 = vadd.xlane.f32.xlu0 %v800
    %v864 = vpop.xlane.xlu0 %863
    %865 = vadd.xlane.f32.xlu0 %v802
    %v866 = vpop.xlane.xlu0 %865
    %867 = vadd.xlane.f32.xlu0 %v804
    %v868 = vpop.xlane.xlu0 %867
    %869 = vadd.xlane.f32.xlu0 %v806
    %v870 = vpop.xlane.xlu0 %869
    %871 = vadd.xlane.f32.xlu0 %v808
    %v872 = vpop.xlane.xlu0 %871
    %873 = vadd.xlane.f32.xlu0 %v810
    %v874 = vpop.xlane.xlu0 %873
    %875 = vadd.xlane.f32.xlu0 %v812
    %v876 = vpop.xlane.xlu0 %875
    %877 = vadd.xlane.f32.xlu0 %v814
    %v878 = vpop.xlane.xlu0 %877
    %879 = vadd.xlane.f32.xlu0 %v816
    %v880 = vpop.xlane.xlu0 %879
    %881 = vadd.xlane.f32.xlu0 %v818
    %v882 = vpop.xlane.xlu0 %881
    %883 = vadd.xlane.f32.xlu0 %v820
    %v884 = vpop.xlane.xlu0 %883
    %885 = vadd.xlane.f32.xlu0 %v822
    %v886 = vpop.xlane.xlu0 %885
    %887 = vadd.xlane.f32.xlu0 %v824
    %v888 = vpop.xlane.xlu0 %887
    %889 = vadd.xlane.f32.xlu0 %v826
    %v890 = vpop.xlane.xlu0 %889
    %891 = vadd.xlane.f32.xlu0 %v828
    %v892 = vpop.xlane.xlu0 %891
    %893 = vadd.xlane.f32.xlu0 %v830
    %v894 = vpop.xlane.xlu0 %893
    %895 = vadd.xlane.f32.xlu0 %v832
    %v896 = vpop.xlane.xlu0 %895
    %897 = vadd.xlane.f32.xlu0 %v834
    %v898 = vpop.xlane.xlu0 %897
    %899 = vadd.xlane.f32.xlu0 %v836
    %v900 = vpop.xlane.xlu0 %899
    %901 = vadd.xlane.f32.xlu0 %v838
    %v902 = vpop.xlane.xlu0 %901
    %903 = vadd.xlane.f32.xlu0 %v840
    %v904 = vpop.xlane.xlu0 %903
    %v905 = vlog2.pop %v842
    %v906 = vmul.f32 %v905, 0.6931472
    %v907 = vlog2.pop %v844
    %v908 = vmul.f32 %v907, 0.6931472
    %v909 = vlog2.pop %v846
    %v910 = vmul.f32 %v909, 0.6931472
    %v911 = vlog2.pop %v848
    %v912 = vmul.f32 %v911, 0.6931472
    %v913 = vlog2.pop %v850
    %v914 = vmul.f32 %v913, 0.6931472
    %v915 = vlog2.pop %v852
    %v916 = vmul.f32 %v915, 0.6931472
    %v917 = vlog2.pop %v854
    %v918 = vmul.f32 %v917, 0.6931472
    %v919 = vlog2.pop %v856
    %v920 = vmul.f32 %v919, 0.6931472
    %v921 = vlog2.pop %v858
    %v922 = vmul.f32 %v921, 0.6931472
    %v923 = vlog2.pop %v860
    %v924 = vmul.f32 %v923, 0.6931472
    %v925 = vlog2.pop %v862
    %v926 = vmul.f32 %v925, 0.6931472
    %v927 = vlog2.pop %v864
    %v928 = vmul.f32 %v927, 0.6931472
    %v929 = vlog2.pop %v866
    %v930 = vmul.f32 %v929, 0.6931472
    %v931 = vlog2.pop %v868
    %v932 = vmul.f32 %v931, 0.6931472
    %v933 = vlog2.pop %v870
    %v934 = vmul.f32 %v933, 0.6931472
    %v935 = vlog2.pop %v872
    %v936 = vmul.f32 %v935, 0.6931472
    %v937 = vlog2.pop %v874
    %v938 = vmul.f32 %v937, 0.6931472
    %v939 = vlog2.pop %v876
    %v940 = vmul.f32 %v939, 0.6931472
    %v941 = vlog2.pop %v878
    %v942 = vmul.f32 %v941, 0.6931472
    %v943 = vlog2.pop %v880
    %v944 = vmul.f32 %v943, 0.6931472
    %v945 = vlog2.pop %v882
    %v946 = vmul.f32 %v945, 0.6931472
    %v947 = vlog2.pop %v884
    %v948 = vmul.f32 %v947, 0.6931472
    %v949 = vlog2.pop %v886
    %v950 = vmul.f32 %v949, 0.6931472
    %v951 = vlog2.pop %v888
    %v952 = vmul.f32 %v951, 0.6931472
    %v953 = vlog2.pop %v890
    %v954 = vmul.f32 %v953, 0.6931472
    %v955 = vlog2.pop %v892
    %v956 = vmul.f32 %v955, 0.6931472
    %v957 = vlog2.pop %v894
    %v958 = vmul.f32 %v957, 0.6931472
    %v959 = vlog2.pop %v896
    %v960 = vmul.f32 %v959, 0.6931472
    %v961 = vlog2.pop %v898
    %v962 = vmul.f32 %v961, 0.6931472
    %v963 = vlog2.pop %v900
    %v964 = vmul.f32 %v963, 0.6931472
    %v965 = vlog2.pop %v902
    %v966 = vmul.f32 %v965, 0.6931472
    %v967 = vlog2.pop %v904
    %v968 = vmul.f32 %v967, 0.6931472
    %v969 = vadd.f32 %v682, %v906
    %v970 = vadd.f32 %v684, %v908
    %v971 = vadd.f32 %v686, %v910
    %v972 = vadd.f32 %v688, %v912
    %v973 = vadd.f32 %v690, %v914
    %v974 = vadd.f32 %v692, %v916
    %v975 = vadd.f32 %v694, %v918
    %v976 = vadd.f32 %v696, %v920
    %v977 = vadd.f32 %v698, %v922
    %v978 = vadd.f32 %v700, %v924
    %v979 = vadd.f32 %v702, %v926
    %v980 = vadd.f32 %v704, %v928
    %v981 = vadd.f32 %v706, %v930
    %v982 = vadd.f32 %v708, %v932
    %v983 = vadd.f32 %v710, %v934
    %v984 = vadd.f32 %v712, %v936
    %v985 = vadd.f32 %v714, %v938
    %v986 = vadd.f32 %v716, %v940
    %v987 = vadd.f32 %v718, %v942
    %v988 = vadd.f32 %v720, %v944
    %v989 = vadd.f32 %v722, %v946
    %v990 = vadd.f32 %v724, %v948
    %v991 = vadd.f32 %v726, %v950
    %v992 = vadd.f32 %v728, %v952
    %v993 = vadd.f32 %v730, %v954
    %v994 = vadd.f32 %v732, %v956
    %v995 = vadd.f32 %v734, %v958
    %v996 = vadd.f32 %v736, %v960
    %v997 = vadd.f32 %v738, %v962
    %v998 = vadd.f32 %v740, %v964
    %v999 = vadd.f32 %v742, %v966
    %v1000 = vadd.f32 %v744, %v968
    %1001 = vset.pattern.permute.xlu0 0
    %1002 = vperm.xlu0 %1001, %v50
    %v1003 = vpop.permute.xlu0 %1002
    %1004 = vset.pattern.permute.xlu0 0
    %1005 = vperm.xlu0 %1004, %v51
    %v1006 = vpop.permute.xlu0 %1005
    %1007 = vset.pattern.permute.xlu0 0
    %1008 = vperm.xlu0 %1007, %v52
    %v1009 = vpop.permute.xlu0 %1008
    %1010 = vset.pattern.permute.xlu0 0
    %1011 = vperm.xlu0 %1010, %v53
    %v1012 = vpop.permute.xlu0 %1011
    %1013 = vset.pattern.permute.xlu0 0
    %1014 = vperm.xlu0 %1013, %v54
    %v1015 = vpop.permute.xlu0 %1014
    %1016 = vset.pattern.permute.xlu0 0
    %1017 = vperm.xlu0 %1016, %v55
    %v1018 = vpop.permute.xlu0 %1017
    %1019 = vset.pattern.permute.xlu0 0
    %1020 = vperm.xlu0 %1019, %v56
    %v1021 = vpop.permute.xlu0 %1020
    %1022 = vset.pattern.permute.xlu0 0
    %1023 = vperm.xlu0 %1022, %v57
    %v1024 = vpop.permute.xlu0 %1023
    %1025 = vset.pattern.permute.xlu0 0
    %1026 = vperm.xlu0 %1025, %v58
    %v1027 = vpop.permute.xlu0 %1026
    %1028 = vset.pattern.permute.xlu0 0
    %1029 = vperm.xlu0 %1028, %v59
    %v1030 = vpop.permute.xlu0 %1029
    %1031 = vset.pattern.permute.xlu0 0
    %1032 = vperm.xlu0 %1031, %v60
    %v1033 = vpop.permute.xlu0 %1032
    %1034 = vset.pattern.permute.xlu0 0
    %1035 = vperm.xlu0 %1034, %v61
    %v1036 = vpop.permute.xlu0 %1035
    %1037 = vset.pattern.permute.xlu0 0
    %1038 = vperm.xlu0 %1037, %v62
    %v1039 = vpop.permute.xlu0 %1038
    %1040 = vset.pattern.permute.xlu0 0
    %1041 = vperm.xlu0 %1040, %v63
    %v1042 = vpop.permute.xlu0 %1041
    %1043 = vset.pattern.permute.xlu0 0
    %1044 = vperm.xlu0 %1043, %v64
    %v1045 = vpop.permute.xlu0 %1044
    %1046 = vset.pattern.permute.xlu0 0
    %1047 = vperm.xlu0 %1046, %v65
    %v1048 = vpop.permute.xlu0 %1047
    %1049 = vset.pattern.permute.xlu0 0
    %1050 = vperm.xlu0 %1049, %v66
    %v1051 = vpop.permute.xlu0 %1050
    %1052 = vset.pattern.permute.xlu0 0
    %1053 = vperm.xlu0 %1052, %v67
    %v1054 = vpop.permute.xlu0 %1053
    %1055 = vset.pattern.permute.xlu0 0
    %1056 = vperm.xlu0 %1055, %v68
    %v1057 = vpop.permute.xlu0 %1056
    %1058 = vset.pattern.permute.xlu0 0
    %1059 = vperm.xlu0 %1058, %v69
    %v1060 = vpop.permute.xlu0 %1059
    %1061 = vset.pattern.permute.xlu0 0
    %1062 = vperm.xlu0 %1061, %v70
    %v1063 = vpop.permute.xlu0 %1062
    %1064 = vset.pattern.permute.xlu0 0
    %1065 = vperm.xlu0 %1064, %v71
    %v1066 = vpop.permute.xlu0 %1065
    %1067 = vset.pattern.permute.xlu0 0
    %1068 = vperm.xlu0 %1067, %v72
    %v1069 = vpop.permute.xlu0 %1068
    %1070 = vset.pattern.permute.xlu0 0
    %1071 = vperm.xlu0 %1070, %v73
    %v1072 = vpop.permute.xlu0 %1071
    %1073 = vset.pattern.permute.xlu0 0
    %1074 = vperm.xlu0 %1073, %v74
    %v1075 = vpop.permute.xlu0 %1074
    %1076 = vset.pattern.permute.xlu0 0
    %1077 = vperm.xlu0 %1076, %v75
    %v1078 = vpop.permute.xlu0 %1077
    %1079 = vset.pattern.permute.xlu0 0
    %1080 = vperm.xlu0 %1079, %v76
    %v1081 = vpop.permute.xlu0 %1080
    %1082 = vset.pattern.permute.xlu0 0
    %1083 = vperm.xlu0 %1082, %v77
    %v1084 = vpop.permute.xlu0 %1083
    %1085 = vset.pattern.permute.xlu0 0
    %1086 = vperm.xlu0 %1085, %v78
    %v1087 = vpop.permute.xlu0 %1086
    %1088 = vset.pattern.permute.xlu0 0
    %1089 = vperm.xlu0 %1088, %v79
    %v1090 = vpop.permute.xlu0 %1089
    %1091 = vset.pattern.permute.xlu0 0
    %1092 = vperm.xlu0 %1091, %v80
    %v1093 = vpop.permute.xlu0 %1092
    %1094 = vset.pattern.permute.xlu0 0
    %1095 = vperm.xlu0 %1094, %v81
    %v1096 = vpop.permute.xlu0 %1095
    %vm1097 = vcmp.eq.s32.totalorder %v83, %v1003
    %vm1098 = vcmp.eq.s32.totalorder %v83, %v1006
    %vm1099 = vcmp.eq.s32.totalorder %v83, %v1009
    %vm1100 = vcmp.eq.s32.totalorder %v83, %v1012
    %vm1101 = vcmp.eq.s32.totalorder %v83, %v1015
    %vm1102 = vcmp.eq.s32.totalorder %v83, %v1018
    %vm1103 = vcmp.eq.s32.totalorder %v83, %v1021
    %vm1104 = vcmp.eq.s32.totalorder %v83, %v1024
    %vm1105 = vcmp.eq.s32.totalorder %v83, %v1027
    %vm1106 = vcmp.eq.s32.totalorder %v83, %v1030
    %vm1107 = vcmp.eq.s32.totalorder %v83, %v1033
    %vm1108 = vcmp.eq.s32.totalorder %v83, %v1036
    %vm1109 = vcmp.eq.s32.totalorder %v83, %v1039
    %vm1110 = vcmp.eq.s32.totalorder %v83, %v1042
    %vm1111 = vcmp.eq.s32.totalorder %v83, %v1045
    %vm1112 = vcmp.eq.s32.totalorder %v83, %v1048
    %vm1113 = vcmp.eq.s32.totalorder %v83, %v1051
    %vm1114 = vcmp.eq.s32.totalorder %v83, %v1054
    %vm1115 = vcmp.eq.s32.totalorder %v83, %v1057
    %vm1116 = vcmp.eq.s32.totalorder %v83, %v1060
    %vm1117 = vcmp.eq.s32.totalorder %v83, %v1063
    %vm1118 = vcmp.eq.s32.totalorder %v83, %v1066
    %vm1119 = vcmp.eq.s32.totalorder %v83, %v1069
    %vm1120 = vcmp.eq.s32.totalorder %v83, %v1072
    %vm1121 = vcmp.eq.s32.totalorder %v83, %v1075
    %vm1122 = vcmp.eq.s32.totalorder %v83, %v1078
    %vm1123 = vcmp.eq.s32.totalorder %v83, %v1081
    %vm1124 = vcmp.eq.s32.totalorder %v83, %v1084
    %vm1125 = vcmp.eq.s32.totalorder %v83, %v1087
    %vm1126 = vcmp.eq.s32.totalorder %v83, %v1090
    %vm1127 = vcmp.eq.s32.totalorder %v83, %v1093
    %vm1128 = vcmp.eq.s32.totalorder %v83, %v1096
    %v1129 = vsel %vm1097, 1, 0
    %v1130 = vsel %vm1098, 1, 0
    %v1131 = vsel %vm1099, 1, 0
    %v1132 = vsel %vm1100, 1, 0
    %v1133 = vsel %vm1101, 1, 0
    %v1134 = vsel %vm1102, 1, 0
    %v1135 = vsel %vm1103, 1, 0
    %v1136 = vsel %vm1104, 1, 0
    %v1137 = vsel %vm1105, 1, 0
    %v1138 = vsel %vm1106, 1, 0
    %v1139 = vsel %vm1107, 1, 0
    %v1140 = vsel %vm1108, 1, 0
    %v1141 = vsel %vm1109, 1, 0
    %v1142 = vsel %vm1110, 1, 0
    %v1143 = vsel %vm1111, 1, 0
    %v1144 = vsel %vm1112, 1, 0
    %v1145 = vsel %vm1113, 1, 0
    %v1146 = vsel %vm1114, 1, 0
    %v1147 = vsel %vm1115, 1, 0
    %v1148 = vsel %vm1116, 1, 0
    %v1149 = vsel %vm1117, 1, 0
    %v1150 = vsel %vm1118, 1, 0
    %v1151 = vsel %vm1119, 1, 0
    %v1152 = vsel %vm1120, 1, 0
    %v1153 = vsel %vm1121, 1, 0
    %v1154 = vsel %vm1122, 1, 0
    %v1155 = vsel %vm1123, 1, 0
    %v1156 = vsel %vm1124, 1, 0
    %v1157 = vsel %vm1125, 1, 0
    %v1158 = vsel %vm1126, 1, 0
    %v1159 = vsel %vm1127, 1, 0
    %v1160 = vsel %vm1128, 1, 0
    %v1161 = vcvt.s32.f32 %v1129
    %v1162 = vcvt.s32.f32 %v1130
    %v1163 = vcvt.s32.f32 %v1131
    %v1164 = vcvt.s32.f32 %v1132
    %v1165 = vcvt.s32.f32 %v1133
    %v1166 = vcvt.s32.f32 %v1134
    %v1167 = vcvt.s32.f32 %v1135
    %v1168 = vcvt.s32.f32 %v1136
    %v1169 = vcvt.s32.f32 %v1137
    %v1170 = vcvt.s32.f32 %v1138
    %v1171 = vcvt.s32.f32 %v1139
    %v1172 = vcvt.s32.f32 %v1140
    %v1173 = vcvt.s32.f32 %v1141
    %v1174 = vcvt.s32.f32 %v1142
    %v1175 = vcvt.s32.f32 %v1143
    %v1176 = vcvt.s32.f32 %v1144
    %v1177 = vcvt.s32.f32 %v1145
    %v1178 = vcvt.s32.f32 %v1146
    %v1179 = vcvt.s32.f32 %v1147
    %v1180 = vcvt.s32.f32 %v1148
    %v1181 = vcvt.s32.f32 %v1149
    %v1182 = vcvt.s32.f32 %v1150
    %v1183 = vcvt.s32.f32 %v1151
    %v1184 = vcvt.s32.f32 %v1152
    %v1185 = vcvt.s32.f32 %v1153
    %v1186 = vcvt.s32.f32 %v1154
    %v1187 = vcvt.s32.f32 %v1155
    %v1188 = vcvt.s32.f32 %v1156
    %v1189 = vcvt.s32.f32 %v1157
    %v1190 = vcvt.s32.f32 %v1158
    %v1191 = vcvt.s32.f32 %v1159
    %v1192 = vcvt.s32.f32 %v1160
    %v1193 = vmul.f32 %v359, %v1161
    %v1194 = vmul.f32 %v364, %v1162
    %v1195 = vmul.f32 %v369, %v1163
    %v1196 = vmul.f32 %v374, %v1164
    %v1197 = vmul.f32 %v379, %v1165
    %v1198 = vmul.f32 %v384, %v1166
    %v1199 = vmul.f32 %v389, %v1167
    %v1200 = vmul.f32 %v394, %v1168
    %v1201 = vmul.f32 %v399, %v1169
    %v1202 = vmul.f32 %v404, %v1170
    %v1203 = vmul.f32 %v409, %v1171
    %v1204 = vmul.f32 %v414, %v1172
    %v1205 = vmul.f32 %v419, %v1173
    %v1206 = vmul.f32 %v424, %v1174
    %v1207 = vmul.f32 %v429, %v1175
    %v1208 = vmul.f32 %v434, %v1176
    %v1209 = vmul.f32 %v439, %v1177
    %v1210 = vmul.f32 %v444, %v1178
    %v1211 = vmul.f32 %v449, %v1179
    %v1212 = vmul.f32 %v454, %v1180
    %v1213 = vmul.f32 %v459, %v1181
    %v1214 = vmul.f32 %v464, %v1182
    %v1215 = vmul.f32 %v469, %v1183
    %v1216 = vmul.f32 %v474, %v1184
    %v1217 = vmul.f32 %v479, %v1185
    %v1218 = vmul.f32 %v484, %v1186
    %v1219 = vmul.f32 %v489, %v1187
    %v1220 = vmul.f32 %v494, %v1188
    %v1221 = vmul.f32 %v499, %v1189
    %v1222 = vmul.f32 %v504, %v1190
    %v1223 = vmul.f32 %v509, %v1191
    %v1224 = vmul.f32 %v514, %v1192
    %1225 = vadd.xlane.f32.xlu0 %v1193
    %v1226 = vpop.xlane.xlu0 %1225
    %1227 = vadd.xlane.f32.xlu0 %v1194
    %v1228 = vpop.xlane.xlu0 %1227
    %1229 = vadd.xlane.f32.xlu0 %v1195
    %v1230 = vpop.xlane.xlu0 %1229
    %1231 = vadd.xlane.f32.xlu0 %v1196
    %v1232 = vpop.xlane.xlu0 %1231
    %1233 = vadd.xlane.f32.xlu0 %v1197
    %v1234 = vpop.xlane.xlu0 %1233
    %1235 = vadd.xlane.f32.xlu0 %v1198
    %v1236 = vpop.xlane.xlu0 %1235
    %1237 = vadd.xlane.f32.xlu0 %v1199
    %v1238 = vpop.xlane.xlu0 %1237
    %1239 = vadd.xlane.f32.xlu0 %v1200
    %v1240 = vpop.xlane.xlu0 %1239
    %1241 = vadd.xlane.f32.xlu0 %v1201
    %v1242 = vpop.xlane.xlu0 %1241
    %1243 = vadd.xlane.f32.xlu0 %v1202
    %v1244 = vpop.xlane.xlu0 %1243
    %1245 = vadd.xlane.f32.xlu0 %v1203
    %v1246 = vpop.xlane.xlu0 %1245
    %1247 = vadd.xlane.f32.xlu0 %v1204
    %v1248 = vpop.xlane.xlu0 %1247
    %1249 = vadd.xlane.f32.xlu0 %v1205
    %v1250 = vpop.xlane.xlu0 %1249
    %1251 = vadd.xlane.f32.xlu0 %v1206
    %v1252 = vpop.xlane.xlu0 %1251
    %1253 = vadd.xlane.f32.xlu0 %v1207
    %v1254 = vpop.xlane.xlu0 %1253
    %1255 = vadd.xlane.f32.xlu0 %v1208
    %v1256 = vpop.xlane.xlu0 %1255
    %1257 = vadd.xlane.f32.xlu0 %v1209
    %v1258 = vpop.xlane.xlu0 %1257
    %1259 = vadd.xlane.f32.xlu0 %v1210
    %v1260 = vpop.xlane.xlu0 %1259
    %1261 = vadd.xlane.f32.xlu0 %v1211
    %v1262 = vpop.xlane.xlu0 %1261
    %1263 = vadd.xlane.f32.xlu0 %v1212
    %v1264 = vpop.xlane.xlu0 %1263
    %1265 = vadd.xlane.f32.xlu0 %v1213
    %v1266 = vpop.xlane.xlu0 %1265
    %1267 = vadd.xlane.f32.xlu0 %v1214
    %v1268 = vpop.xlane.xlu0 %1267
    %1269 = vadd.xlane.f32.xlu0 %v1215
    %v1270 = vpop.xlane.xlu0 %1269
    %1271 = vadd.xlane.f32.xlu0 %v1216
    %v1272 = vpop.xlane.xlu0 %1271
    %1273 = vadd.xlane.f32.xlu0 %v1217
    %v1274 = vpop.xlane.xlu0 %1273
    %1275 = vadd.xlane.f32.xlu0 %v1218
    %v1276 = vpop.xlane.xlu0 %1275
    %1277 = vadd.xlane.f32.xlu0 %v1219
    %v1278 = vpop.xlane.xlu0 %1277
    %1279 = vadd.xlane.f32.xlu0 %v1220
    %v1280 = vpop.xlane.xlu0 %1279
    %1281 = vadd.xlane.f32.xlu0 %v1221
    %v1282 = vpop.xlane.xlu0 %1281
    %1283 = vadd.xlane.f32.xlu0 %v1222
    %v1284 = vpop.xlane.xlu0 %1283
    %1285 = vadd.xlane.f32.xlu0 %v1223
    %v1286 = vpop.xlane.xlu0 %1285
    %1287 = vadd.xlane.f32.xlu0 %v1224
    %v1288 = vpop.xlane.xlu0 %1287
    %v1289 = vsub.f32 %v969, %v1226
    %v1290 = vsub.f32 %v970, %v1228
    %v1291 = vsub.f32 %v971, %v1230
    %v1292 = vsub.f32 %v972, %v1232
    %v1293 = vsub.f32 %v973, %v1234
    %v1294 = vsub.f32 %v974, %v1236
    %v1295 = vsub.f32 %v975, %v1238
    %v1296 = vsub.f32 %v976, %v1240
    %v1297 = vsub.f32 %v977, %v1242
    %v1298 = vsub.f32 %v978, %v1244
    %v1299 = vsub.f32 %v979, %v1246
    %v1300 = vsub.f32 %v980, %v1248
    %v1301 = vsub.f32 %v981, %v1250
    %v1302 = vsub.f32 %v982, %v1252
    %v1303 = vsub.f32 %v983, %v1254
    %v1304 = vsub.f32 %v984, %v1256
    %v1305 = vsub.f32 %v985, %v1258
    %v1306 = vsub.f32 %v986, %v1260
    %v1307 = vsub.f32 %v987, %v1262
    %v1308 = vsub.f32 %v988, %v1264
    %v1309 = vsub.f32 %v989, %v1266
    %v1310 = vsub.f32 %v990, %v1268
    %v1311 = vsub.f32 %v991, %v1270
    %v1312 = vsub.f32 %v992, %v1272
    %v1313 = vsub.f32 %v993, %v1274
    %v1314 = vsub.f32 %v994, %v1276
    %v1315 = vsub.f32 %v995, %v1278
    %v1316 = vsub.f32 %v996, %v1280
    %v1317 = vsub.f32 %v997, %v1282
    %v1318 = vsub.f32 %v998, %v1284
    %v1319 = vsub.f32 %v999, %v1286
    %v1320 = vsub.f32 %v1000, %v1288
    %v1321 = vsel %vm617, %v1289, 0.0
    %v1322 = vsel %vm618, %v1290, 0.0
    %v1323 = vsel %vm619, %v1291, 0.0
    %v1324 = vsel %vm620, %v1292, 0.0
    %v1325 = vsel %vm621, %v1293, 0.0
    %v1326 = vsel %vm622, %v1294, 0.0
    %v1327 = vsel %vm623, %v1295, 0.0
    %v1328 = vsel %vm624, %v1296, 0.0
    %v1329 = vsel %vm625, %v1297, 0.0
    %v1330 = vsel %vm626, %v1298, 0.0
    %v1331 = vsel %vm627, %v1299, 0.0
    %v1332 = vsel %vm628, %v1300, 0.0
    %v1333 = vsel %vm629, %v1301, 0.0
    %v1334 = vsel %vm630, %v1302, 0.0
    %v1335 = vsel %vm631, %v1303, 0.0
    %v1336 = vsel %vm632, %v1304, 0.0
    %v1337 = vsel %vm633, %v1305, 0.0
    %v1338 = vsel %vm634, %v1306, 0.0
    %v1339 = vsel %vm635, %v1307, 0.0
    %v1340 = vsel %vm636, %v1308, 0.0
    %v1341 = vsel %vm637, %v1309, 0.0
    %v1342 = vsel %vm638, %v1310, 0.0
    %v1343 = vsel %vm639, %v1311, 0.0
    %v1344 = vsel %vm640, %v1312, 0.0
    %v1345 = vsel %vm641, %v1313, 0.0
    %v1346 = vsel %vm642, %v1314, 0.0
    %v1347 = vsel %vm643, %v1315, 0.0
    %v1348 = vsel %vm644, %v1316, 0.0
    %v1349 = vsel %vm645, %v1317, 0.0
    %v1350 = vsel %vm646, %v1318, 0.0
    %v1351 = vsel %vm647, %v1319, 0.0
    %v1352 = vsel %vm648, %v1320, 0.0
    %vm1353 = vcmask 7168
    %v1354 = vsel %vm1353, %v1321, 0.0
    %v1355 = vsel %vm1353, %v1322, 0.0
    %v1356 = vadd.f32 %v1354, %v1355
    %v1357 = vsel %vm1353, %v1323, 0.0
    %v1358 = vadd.f32 %v1356, %v1357
    %v1359 = vsel %vm1353, %v1324, 0.0
    %v1360 = vadd.f32 %v1358, %v1359
    %v1361 = vsel %vm1353, %v1325, 0.0
    %v1362 = vadd.f32 %v1360, %v1361
    %v1363 = vsel %vm1353, %v1326, 0.0
    %v1364 = vadd.f32 %v1362, %v1363
    %v1365 = vsel %vm1353, %v1327, 0.0
    %v1366 = vadd.f32 %v1364, %v1365
    %v1367 = vsel %vm1353, %v1328, 0.0
    %v1368 = vadd.f32 %v1366, %v1367
    %v1369 = vsel %vm1353, %v1329, 0.0
    %v1370 = vadd.f32 %v1368, %v1369
    %v1371 = vsel %vm1353, %v1330, 0.0
    %v1372 = vadd.f32 %v1370, %v1371
    %v1373 = vsel %vm1353, %v1331, 0.0
    %v1374 = vadd.f32 %v1372, %v1373
    %v1375 = vsel %vm1353, %v1332, 0.0
    %v1376 = vadd.f32 %v1374, %v1375
    %v1377 = vsel %vm1353, %v1333, 0.0
    %v1378 = vadd.f32 %v1376, %v1377
    %v1379 = vsel %vm1353, %v1334, 0.0
    %v1380 = vadd.f32 %v1378, %v1379
    %v1381 = vsel %vm1353, %v1335, 0.0
    %v1382 = vadd.f32 %v1380, %v1381
    %v1383 = vsel %vm1353, %v1336, 0.0
    %v1384 = vadd.f32 %v1382, %v1383
    %v1385 = vsel %vm1353, %v1337, 0.0
    %v1386 = vadd.f32 %v1384, %v1385
    %v1387 = vsel %vm1353, %v1338, 0.0
    %v1388 = vadd.f32 %v1386, %v1387
    %v1389 = vsel %vm1353, %v1339, 0.0
    %v1390 = vadd.f32 %v1388, %v1389
    %v1391 = vsel %vm1353, %v1340, 0.0
    %v1392 = vadd.f32 %v1390, %v1391
    %v1393 = vsel %vm1353, %v1341, 0.0
    %v1394 = vadd.f32 %v1392, %v1393
    %v1395 = vsel %vm1353, %v1342, 0.0
    %v1396 = vadd.f32 %v1394, %v1395
    %v1397 = vsel %vm1353, %v1343, 0.0
    %v1398 = vadd.f32 %v1396, %v1397
    %v1399 = vsel %vm1353, %v1344, 0.0
    %v1400 = vadd.f32 %v1398, %v1399
    %v1401 = vsel %vm1353, %v1345, 0.0
    %v1402 = vadd.f32 %v1400, %v1401
    %v1403 = vsel %vm1353, %v1346, 0.0
    %v1404 = vadd.f32 %v1402, %v1403
    %v1405 = vsel %vm1353, %v1347, 0.0
    %v1406 = vadd.f32 %v1404, %v1405
    %v1407 = vsel %vm1353, %v1348, 0.0
    %v1408 = vadd.f32 %v1406, %v1407
    %v1409 = vsel %vm1353, %v1349, 0.0
    %v1410 = vadd.f32 %v1408, %v1409
    %v1411 = vsel %vm1353, %v1350, 0.0
    %v1412 = vadd.f32 %v1410, %v1411
    %v1413 = vsel %vm1353, %v1351, 0.0
    %v1414 = vadd.f32 %v1412, %v1413
    %v1415 = vsel %vm1353, %v1352, 0.0
    %v1416 = vadd.f32 %v1414, %v1415
    %1417 = vadd.xlane.f32.xlu0 %v1416
    %v1418 = vpop.xlane.xlu0 %1417
    %v1419 = vrot.slane %v1418, 4
    %v1420 = vadd.f32 %v1418, %v1419
    %v1421 = vrot.slane %v1420, 2
    %v1422 = vadd.f32 %v1420, %v1421
    %v1423 = vrot.slane %v1422, 1
    %v1424 = vadd.f32 %v1422, %v1423
    %s1425 = vtos %v1424
    %s1426 = smul.f32 %s1425, 0.0625
    %v1427 = vstv %s1426
    %1428 = vst [vmem:[#allocation4] sm:$0x1] %v1427
    // Predicated region
    $region14: #{tpu_custom_call.1} parent=1 // pred_check
      _
    $region15: #{tpu_custom_call.1} parent=1 // pred_check_branch
      %1430 = sbr.rel (0) target = $region17
    $region16: #{tpu_custom_call.1} parent=1 // pred_region
      %s1432 = ssub.s32 4096, 4096
      %1433 = vsyncadd [#allocation3], %s1432
      %s1434 = sshll.u32 [#allocation2], 4
      %s1435 = int_to_ptr.vmem [resolvable:$true] %s1434
      %1440 = dma.vmem_to_hbm [thread:$0]  %s1435, 4096, %s3, [#allocation3], 128, 128, 8
    $region17: #{tpu_custom_call.1} parent=1 // pred_fallthru
      _
    // Predicated region
    $region18: #{tpu_custom_call.1} parent=1 // pred_check
      _
    $region19: #{tpu_custom_call.1} parent=1 // pred_check_branch
      %1442 = sbr.rel (0) target = $region21
    $region20: #{tpu_custom_call.1} parent=1 // pred_region
      %s1444 = ssub.s32 16, 16
      %1445 = vsyncadd [#allocation5], %s1444
      %s1447 = sshll.u32 [#allocation4], 4
      %s1448 = int_to_ptr.vmem [resolvable:$true] %s1447
      %1450 = dma.vmem_to_hbm [thread:$0]  %s1448, 16, %s4, [#allocation5]
    $region21: #{tpu_custom_call.1} parent=1 // pred_fallthru
      _
    // Predicated region
    $region22: #{tpu_custom_call.1} parent=1 // pred_check
      _
    $region23: #{tpu_custom_call.1} parent=1 // pred_check_branch
      %1452 = sbr.rel (0) target = $region25
    $region24: #{tpu_custom_call.1} parent=1 // pred_region
      %1453 = dma.done [#allocation3], 4096
    $region25: #{tpu_custom_call.1} parent=1 // pred_fallthru
      _
    // Predicated region
    $region26: #{tpu_custom_call.1} parent=1 // pred_check
      _
    $region27: #{tpu_custom_call.1} parent=1 // pred_check_branch
      %1455 = sbr.rel (0) target = $region29
    $region28: #{tpu_custom_call.1} parent=1 // pred_region
      %1456 = dma.done [#allocation5], 16
    $region29: #{tpu_custom_call.1} parent=1 // pred_fallthru
      _
    %1457 = vsyncpa [#allocation3], 1
    %1458 = vsyncpa [#allocation5], 1

</llo_original>
